<compile_context>
chip_gen: v7x
topology: tpu7x:2x2x1
jax: 0.10.0
libtpu: 0.0.40
codegen_flags: <defaults>
</compile_context>

<pallas_src>
import math

import jax
import jax.numpy as jnp
from jax.experimental import pallas as pl
from jax.experimental.pallas import tpu as pltpu

# ---- small hyperparameters consistent with the module ----
VOCAB_SIZE = 64
N_EMB      = 32
N_HEAD     = 4
N_LAYER    = 2
BLOCK_SIZE = 8
HEAD_SIZE  = N_EMB // N_HEAD          # 8 (the module builds ONE head of this size)
BATCH      = 2
LN_EPS     = 1e-5                     # torch.nn.LayerNorm default
LANES      = 128                      # packed-slab lane width


# ----------------------------- in-kernel math helpers -----------------------------
def _erf(x):
    # Abramowitz & Stegun 7.1.26 rational approx, |err| < 1.5e-7 (f32-exact).
    a1, a2, a3, a4, a5 = 0.254829592, -0.284496736, 1.421413741, -1.453152027, 1.061405429
    p = 0.3275911
    sgn = jnp.where(x >= 0.0, 1.0, -1.0)
    ax = jnp.abs(x)
    t = 1.0 / (1.0 + p * ax)
    poly = ((((a5 * t + a4) * t + a3) * t + a2) * t + a1) * t
    return sgn * (1.0 - poly * jnp.exp(-ax * ax))


def _gelu(x):
    # exact (erf-based) GELU, matching torch.nn.GELU() default
    return 0.5 * x * (1.0 + _erf(x * (1.0 / math.sqrt(2.0))))


def _layernorm(x, w, b):
    mu = jnp.mean(x, axis=-1, keepdims=True)
    var = jnp.mean((x - mu) * (x - mu), axis=-1, keepdims=True)
    return (x - mu) * jax.lax.rsqrt(var + LN_EPS) * w + b


# ----------------------------- parameter packing (init-time) -----------------------------
def _pad2d(arr, rows, cols=LANES):
    r, c = arr.shape
    return jnp.pad(arr, ((0, rows - r), (0, cols - c)))


def pack_params(params, B, T):
    """Pack every constant the kernel needs into ONE (R, 128) f32 slab.

    Each tensor is padded to a multiple of 8 rows and 128 lanes and stacked; the
    kernel slices pieces back out with static offsets (sublane-aligned, lane offset 0).
    Returns (slab, offsets_dict).
    """
    BT = B * T
    pieces, off = [], {}
    cur = 0

    def add(name, arr):
        nonlocal cur
        arr = jnp.asarray(arr, jnp.float32)
        rp = -(-arr.shape[0] // 8) * 8
        pieces.append(_pad2d(arr, rp))
        off[name] = cur
        cur += rp

    # embedding tables & host-precomputed helpers
    add("wte", params["wte"])                                        # (V, E)
    add("pos", jnp.tile(params["wpe"][0:T, :], (B, 1)))              # (BT, E) pre-tiled
    r = jnp.arange(BT, dtype=jnp.int32)
    rb, rt = r // T, r % T
    allow = (rb[:, None] == rb[None, :]) & (rt[:, None] >= rt[None, :])
    add("mask", jnp.where(allow, 0.0, -1e30).astype(jnp.float32))    # (BT, BT) block-diag causal
    sel = jnp.zeros((8, BT), jnp.float32)
    sel = sel.at[jnp.arange(B), (jnp.arange(B) + 1) * T - 1].set(1.0)
    add("sel", sel)                                                  # (8, BT) last-token one-hot

    # per-layer weights
    for l, bp in enumerate(params["blocks"]):
        vecs = jnp.zeros((8, LANES), jnp.float32)                    # all 1-row vectors, 1 tile
        vecs = vecs.at[0, 0:N_EMB].set(bp["ln1_w"][0])
        vecs = vecs.at[1, 0:N_EMB].set(bp["ln1_b"][0])
        vecs = vecs.at[2, 0:N_EMB].set(bp["ln2_w"][0])
        vecs = vecs.at[3, 0:N_EMB].set(bp["ln2_b"][0])
        vecs = vecs.at[4, 0:N_EMB].set(bp["bproj"][0])
        vecs = vecs.at[5, 0:N_EMB].set(bp["b2"][0])
        vecs = vecs.at[6, 0:4 * N_EMB].set(bp["b1"][0])
        add(f"vec{l}", vecs)
        add(f"wqkv{l}", jnp.concatenate([bp["wq"], bp["wk"], bp["wv"]], axis=1))  # (E, 3*hs)
        add(f"wproj{l}", bp["wproj"])                                # (hs, E)
        add(f"w1{l}", bp["w1"])                                      # (E, 4E)
        add(f"w2{l}", bp["w2"])                                      # (4E, E)

    fin = jnp.zeros((8, LANES), jnp.float32)
    fin = fin.at[0, 0:N_EMB].set(params["lnf_w"][0])
    fin = fin.at[1, 0:N_EMB].set(params["lnf_b"][0])
    add("fin", fin)
    add("whead", params["w_head"])                                   # (E, V) -> lane-padded to 128

    return jnp.concatenate(pieces, axis=0), off


# ----------------------------------- fused kernel -----------------------------------
def _make_fused_kernel(B, T, off):
    BT = B * T
    scale = 1.0 / math.sqrt(HEAD_SIZE)               # SDPA default scale

    def kernel(idx_ref,                               # (BT, 1) int32 in VMEM
               slab_ref,                              # (R, 128) f32 packed constants
               out_ref):                              # (8, 128) f32 lane-dense output
        # ---- token + positional embedding: one broadcast compare + one MXU dot ----
        col = jax.lax.broadcasted_iota(jnp.int32, (BT, VOCAB_SIZE), 1)
        onehot = (idx_ref[...] == col).astype(jnp.float32)                       # (BT, V)
        wte = slab_ref[off["wte"]:off["wte"] + VOCAB_SIZE, 0:N_EMB]
        x = jnp.dot(onehot, wte, preferred_element_type=jnp.float32)             # (BT, E)
        x = x + slab_ref[off["pos"]:off["pos"] + BT, 0:N_EMB]                    # embd drop = id
        mask_bias = slab_ref[off["mask"]:off["mask"] + BT, 0:BT]                 # (BT, BT)

        for l in range(N_LAYER):
            ov = off[f"vec{l}"]
            ln1w  = slab_ref[ov + 0:ov + 1, 0:N_EMB]
            ln1b  = slab_ref[ov + 1:ov + 2, 0:N_EMB]
            ln2w  = slab_ref[ov + 2:ov + 3, 0:N_EMB]
            ln2b  = slab_ref[ov + 3:ov + 4, 0:N_EMB]
            bproj = slab_ref[ov + 4:ov + 5, 0:N_EMB]
            b2    = slab_ref[ov + 5:ov + 6, 0:N_EMB]
            b1    = slab_ref[ov + 6:ov + 7, 0:4 * N_EMB]
            oq = off[f"wqkv{l}"]
            wqkv  = slab_ref[oq:oq + N_EMB, 0:3 * HEAD_SIZE]
            op_ = off[f"wproj{l}"]
            wproj = slab_ref[op_:op_ + HEAD_SIZE, 0:N_EMB]
            o1 = off[f"w1{l}"]
            w1    = slab_ref[o1:o1 + N_EMB, 0:4 * N_EMB]
            o2 = off[f"w2{l}"]
            w2    = slab_ref[o2:o2 + 4 * N_EMB, 0:N_EMB]

            # ---- pre-LN attention: x = x + Attn(LN1(x)) ----
            h = _layernorm(x, ln1w, ln1b)
            qkv = jnp.dot(h, wqkv, preferred_element_type=jnp.float32)           # (BT, 3*hs)
            q = qkv[:, 0:HEAD_SIZE]
            k = qkv[:, HEAD_SIZE:2 * HEAD_SIZE]
            v = qkv[:, 2 * HEAD_SIZE:3 * HEAD_SIZE]
            s = jax.lax.dot_general(q, k, (((1,), (1,)), ((), ())),
                                    preferred_element_type=jnp.float32) * scale  # (BT, BT)
            s = s + mask_bias
            s = s - jnp.max(s, axis=-1, keepdims=True)
            p = jnp.exp(s)
            inv = pl.reciprocal(jnp.sum(p, axis=-1, keepdims=True), approx=True)
            a = jnp.dot(p * inv, v, preferred_element_type=jnp.float32)          # (BT, hs)
            x = x + jnp.dot(a, wproj, preferred_element_type=jnp.float32) + bproj

            # ---- pre-LN MLP: x = x + FFN(LN2(x)) ----
            h = _layernorm(x, ln2w, ln2b)
            hmid = _gelu(jnp.dot(h, w1, preferred_element_type=jnp.float32) + b1)
            x = x + jnp.dot(hmid, w2, preferred_element_type=jnp.float32) + b2

        # ---- last-token rows via one-hot selection matmul, final LN, LM head ----
        sel = slab_ref[off["sel"]:off["sel"] + 8, 0:BT]                          # (8, BT)
        x_last = jnp.dot(sel, x, preferred_element_type=jnp.float32)             # (8, E)
        ofin = off["fin"]
        lnfw = slab_ref[ofin + 0:ofin + 1, 0:N_EMB]
        lnfb = slab_ref[ofin + 1:ofin + 2, 0:N_EMB]
        hN = _layernorm(x_last, lnfw, lnfb)
        whead = slab_ref[off["whead"]:off["whead"] + N_EMB, 0:LANES]             # (E, 128)
        out_ref[...] = jnp.dot(hN, whead, preferred_element_type=jnp.float32)    # (8, 128)

    return kernel


# ----------------------------------- forward factory -----------------------------------
def make_gpt2_forward(params, B, T):
    """Builds the packed slab + jitted forward once; returns forward(idx) -> (logits, None)."""
    assert T <= BLOCK_SIZE, f"Cannot forward sequence of length {T}, block size is only {BLOCK_SIZE}"
    slab, off = pack_params(params, B, T)
    kernel = _make_fused_kernel(B, T, off)

    call = pl.pallas_call(
        kernel,
        out_shape=jax.ShapeDtypeStruct((8, LANES), jnp.float32),
        in_specs=[pl.BlockSpec(memory_space=pltpu.MemorySpace.VMEM),
                  pl.BlockSpec(memory_space=pltpu.MemorySpace.VMEM)],
        out_specs=pl.BlockSpec(memory_space=pltpu.MemorySpace.VMEM),
        compiler_params=pltpu.CompilerParams(vmem_limit_bytes=2 * 1024 * 1024),
    )

    @jax.jit
    def forward(idx):
        idx_col = idx.reshape(B * T, 1).astype(jnp.int32)
        out = call(idx_col, slab)
        logits = out[0:B, 0:VOCAB_SIZE][:, None, :]    # (B, 1, V)
        return logits, None

    return forward


# ----------------------------- deterministic parameter init -----------------------------
def init_params(key):
    def nrm(k, shape, std=0.02):
        return (std * jax.random.normal(k, shape, dtype=jnp.float32)).astype(jnp.float32)

    n_keys = 2 + 6 * N_LAYER + 2
    keys = iter(jax.random.split(key, n_keys))
    params = {
        "wte": nrm(next(keys), (VOCAB_SIZE, N_EMB)),        # nn.Embedding, normal(0, .02)
        "wpe": nrm(next(keys), (BLOCK_SIZE, N_EMB)),
    }
    blocks = []
    for _ in range(N_LAYER):
        blocks.append({
            "ln1_w": jnp.ones((1, N_EMB), jnp.float32),
            "ln1_b": jnp.zeros((1, N_EMB), jnp.float32),
            "wq": nrm(next(keys), (N_EMB, HEAD_SIZE)),       # Linear weights stored (in, out)
            "wk": nrm(next(keys), (N_EMB, HEAD_SIZE)),
            "wv": nrm(next(keys), (N_EMB, HEAD_SIZE)),
            "wproj": nrm(next(keys), (HEAD_SIZE, N_EMB)),
            "bproj": jnp.zeros((1, N_EMB), jnp.float32),
            "ln2_w": jnp.ones((1, N_EMB), jnp.float32),
            "ln2_b": jnp.zeros((1, N_EMB), jnp.float32),
            "w1": nrm(next(keys), (N_EMB, 4 * N_EMB)),
            "b1": jnp.zeros((1, 4 * N_EMB), jnp.float32),
            "w2": nrm(next(keys), (4 * N_EMB, N_EMB)),
            "b2": jnp.zeros((1, N_EMB), jnp.float32),
        })
    params["blocks"] = blocks
    # final LayerNorm ('normalize') weight overridden to normal(0, 0.02/sqrt(2*n_layer)) per __init__
    params["lnf_w"] = nrm(next(keys), (1, N_EMB), std=0.02 / math.sqrt(2 * N_LAYER))
    params["lnf_b"] = jnp.zeros((1, N_EMB), jnp.float32)
    params["w_head"] = nrm(next(keys), (N_EMB, VOCAB_SIZE))  # lm head, bias=False
    return params


if __name__ == "__main__":
    root = jax.random.PRNGKey(0)
    pkey, ikey = jax.random.split(root)
    params = init_params(pkey)
    idx = jax.random.randint(ikey, (BATCH, BLOCK_SIZE), 0, VOCAB_SIZE, dtype=jnp.int32)

    forward = make_gpt2_forward(params, BATCH, BLOCK_SIZE)   # pack + jit once (hoisted)
    logits, loss = forward(idx)
    logits = jax.block_until_ready(logits)

    assert logits.shape == (BATCH, 1, VOCAB_SIZE), logits.shape
    assert loss is None
    assert bool(jnp.all(jnp.isfinite(logits)))
    print("KERNEL_OK")
</pallas_src>

<mosaic_0001>
module attributes {stable_mosaic.version = 11 : i64} {
  func.func @kernel(%arg0: memref<16x1xi32, #tpu.memory_space<vmem>>, %arg1: memref<560x128xf32, #tpu.memory_space<vmem>>, %arg2: memref<8x128xf32, #tpu.memory_space<vmem>>) attributes {dimension_semantics = [], scalar_prefetch = 0 : i64, scratch_operands = 0 : i64, tpu.core_type = #tpu.core_type<tc>} {
    %0 = tpu.iota {dimensions = array<i32: 1>} : vector<16x64xi32>
    %c0 = arith.constant 0 : index
    %c0_0 = arith.constant 0 : index
    %1 = vector.load %arg0[%c0, %c0_0] : memref<16x1xi32, #tpu.memory_space<vmem>>, vector<16x1xi32>
    %2 = vector.broadcast %1 : vector<16x1xi32> to vector<16x64xi32>
    %3 = arith.cmpi eq, %2, %0 : vector<16x64xi32>
    %4 = arith.extui %3 : vector<16x64xi1> to vector<16x64xi32>
    %5 = arith.sitofp %4 : vector<16x64xi32> to vector<16x64xf32>
    %c0_1 = arith.constant 0 : index
    %c0_2 = arith.constant 0 : index
    %6 = vector.load %arg1[%c0_1, %c0_2] : memref<560x128xf32, #tpu.memory_space<vmem>>, vector<64x32xf32>
    %cst = arith.constant dense<0.000000e+00> : vector<16x32xf32>
    %7 = tpu.matmul %5, %6, %cst {dimension_numbers = #tpu.dot_dimension_numbers<[1], [0], [0], [1], [0, 0, 1, 1], [], []>} : vector<16x64xf32>, vector<64x32xf32>, vector<16x32xf32> -> vector<16x32xf32>
    %c64 = arith.constant 64 : index
    %c0_3 = arith.constant 0 : index
    %8 = vector.load %arg1[%c64, %c0_3] : memref<560x128xf32, #tpu.memory_space<vmem>>, vector<16x32xf32>
    %9 = arith.addf %7, %8 : vector<16x32xf32>
    %c80 = arith.constant 80 : index
    %c0_4 = arith.constant 0 : index
    %10 = vector.load %arg1[%c80, %c0_4] : memref<560x128xf32, #tpu.memory_space<vmem>>, vector<16x16xf32>
    %c104 = arith.constant 104 : index
    %c0_5 = arith.constant 0 : index
    %11 = vector.load %arg1[%c104, %c0_5] : memref<560x128xf32, #tpu.memory_space<vmem>>, vector<1x32xf32>
    %c105 = arith.constant 105 : index
    %c0_6 = arith.constant 0 : index
    %12 = vector.load %arg1[%c105, %c0_6] : memref<560x128xf32, #tpu.memory_space<vmem>>, vector<1x32xf32>
    %c106 = arith.constant 106 : index
    %c0_7 = arith.constant 0 : index
    %13 = vector.load %arg1[%c106, %c0_7] : memref<560x128xf32, #tpu.memory_space<vmem>>, vector<1x32xf32>
    %c107 = arith.constant 107 : index
    %c0_8 = arith.constant 0 : index
    %14 = vector.load %arg1[%c107, %c0_8] : memref<560x128xf32, #tpu.memory_space<vmem>>, vector<1x32xf32>
    %c108 = arith.constant 108 : index
    %c0_9 = arith.constant 0 : index
    %15 = vector.load %arg1[%c108, %c0_9] : memref<560x128xf32, #tpu.memory_space<vmem>>, vector<1x32xf32>
    %c109 = arith.constant 109 : index
    %c0_10 = arith.constant 0 : index
    %16 = vector.load %arg1[%c109, %c0_10] : memref<560x128xf32, #tpu.memory_space<vmem>>, vector<1x32xf32>
    %c110 = arith.constant 110 : index
    %c0_11 = arith.constant 0 : index
    %17 = vector.load %arg1[%c110, %c0_11] : memref<560x128xf32, #tpu.memory_space<vmem>>, vector<1x128xf32>
    %c112 = arith.constant 112 : index
    %c0_12 = arith.constant 0 : index
    %18 = vector.load %arg1[%c112, %c0_12] : memref<560x128xf32, #tpu.memory_space<vmem>>, vector<32x24xf32>
    %c144 = arith.constant 144 : index
    %c0_13 = arith.constant 0 : index
    %19 = vector.load %arg1[%c144, %c0_13] : memref<560x128xf32, #tpu.memory_space<vmem>>, vector<8x32xf32>
    %c152 = arith.constant 152 : index
    %c0_14 = arith.constant 0 : index
    %20 = vector.load %arg1[%c152, %c0_14] : memref<560x128xf32, #tpu.memory_space<vmem>>, vector<32x128xf32>
    %c184 = arith.constant 184 : index
    %c0_15 = arith.constant 0 : index
    %21 = vector.load %arg1[%c184, %c0_15] : memref<560x128xf32, #tpu.memory_space<vmem>>, vector<128x32xf32>
    %cst_16 = arith.constant dense<0.000000e+00> : vector<16xf32>
    %22 = vector.multi_reduction <add>, %9, %cst_16 [1] : vector<16x32xf32> to vector<16xf32>
    %23 = vector.shape_cast %22 : vector<16xf32> to vector<16x1xf32>
    %cst_17 = arith.constant 3.200000e+01 : f32
    %24 = vector.broadcast %cst_17 : f32 to vector<16x1xf32>
    %25 = arith.divf %23, %24 : vector<16x1xf32>
    %26 = vector.broadcast %25 : vector<16x1xf32> to vector<16x32xf32>
    %27 = arith.subf %9, %26 : vector<16x32xf32>
    %28 = vector.broadcast %25 : vector<16x1xf32> to vector<16x32xf32>
    %29 = arith.subf %9, %28 : vector<16x32xf32>
    %30 = arith.mulf %27, %29 : vector<16x32xf32>
    %cst_18 = arith.constant dense<0.000000e+00> : vector<16xf32>
    %31 = vector.multi_reduction <add>, %30, %cst_18 [1] : vector<16x32xf32> to vector<16xf32>
    %32 = vector.shape_cast %31 : vector<16xf32> to vector<16x1xf32>
    %cst_19 = arith.constant 3.200000e+01 : f32
    %33 = vector.broadcast %cst_19 : f32 to vector<16x1xf32>
    %34 = arith.divf %32, %33 : vector<16x1xf32>
    %35 = vector.broadcast %25 : vector<16x1xf32> to vector<16x32xf32>
    %36 = arith.subf %9, %35 : vector<16x32xf32>
    %cst_20 = arith.constant 9.99999974E-6 : f32
    %37 = vector.broadcast %cst_20 : f32 to vector<16x1xf32>
    %38 = arith.addf %34, %37 : vector<16x1xf32>
    %39 = math.rsqrt %38 : vector<16x1xf32>
    %40 = vector.broadcast %39 : vector<16x1xf32> to vector<16x32xf32>
    %41 = arith.mulf %36, %40 : vector<16x32xf32>
    %42 = vector.broadcast %11 : vector<1x32xf32> to vector<16x32xf32>
    %43 = arith.mulf %41, %42 : vector<16x32xf32>
    %44 = vector.broadcast %12 : vector<1x32xf32> to vector<16x32xf32>
    %45 = arith.addf %43, %44 : vector<16x32xf32>
    %cst_21 = arith.constant dense<0.000000e+00> : vector<16x24xf32>
    %46 = tpu.matmul %45, %18, %cst_21 {dimension_numbers = #tpu.dot_dimension_numbers<[1], [0], [0], [1], [0, 0, 1, 1], [], []>} : vector<16x32xf32>, vector<32x24xf32>, vector<16x24xf32> -> vector<16x24xf32>
    %47 = vector.extract_strided_slice %46 {offsets = [0, 0], sizes = [16, 8], strides = [1, 1]} : vector<16x24xf32> to vector<16x8xf32>
    %48 = vector.extract_strided_slice %46 {offsets = [0, 8], sizes = [16, 8], strides = [1, 1]} : vector<16x24xf32> to vector<16x8xf32>
    %49 = vector.extract_strided_slice %46 {offsets = [0, 16], sizes = [16, 8], strides = [1, 1]} : vector<16x24xf32> to vector<16x8xf32>
    %cst_22 = arith.constant dense<0.000000e+00> : vector<16x16xf32>
    %50 = tpu.matmul %47, %48, %cst_22 {dimension_numbers = #tpu.dot_dimension_numbers<[1], [1], [0], [0], [0, 0, 1, 0], [], []>} : vector<16x8xf32>, vector<16x8xf32>, vector<16x16xf32> -> vector<16x16xf32>
    %cst_23 = arith.constant 0.353553385 : f32
    %51 = vector.broadcast %cst_23 : f32 to vector<16x16xf32>
    %52 = arith.mulf %50, %51 : vector<16x16xf32>
    %53 = arith.addf %52, %10 : vector<16x16xf32>
    %cst_24 = arith.constant dense<0xFF800000> : vector<16xf32>
    %54 = vector.multi_reduction <maximumf>, %53, %cst_24 [1] : vector<16x16xf32> to vector<16xf32>
    %55 = vector.shape_cast %54 : vector<16xf32> to vector<16x1xf32>
    %56 = vector.broadcast %55 : vector<16x1xf32> to vector<16x16xf32>
    %57 = arith.subf %53, %56 : vector<16x16xf32>
    %58 = math.exp %57 : vector<16x16xf32>
    %cst_25 = arith.constant dense<0.000000e+00> : vector<16xf32>
    %59 = vector.multi_reduction <add>, %58, %cst_25 [1] : vector<16x16xf32> to vector<16xf32>
    %60 = vector.shape_cast %59 : vector<16xf32> to vector<16x1xf32>
    %61 = tpu.reciprocal %60 {approx = true} : vector<16x1xf32> -> vector<16x1xf32>
    %62 = vector.broadcast %61 : vector<16x1xf32> to vector<16x16xf32>
    %63 = arith.mulf %58, %62 : vector<16x16xf32>
    %cst_26 = arith.constant dense<0.000000e+00> : vector<16x8xf32>
    %64 = tpu.matmul %63, %49, %cst_26 {dimension_numbers = #tpu.dot_dimension_numbers<[1], [0], [0], [1], [0, 0, 1, 1], [], []>} : vector<16x16xf32>, vector<16x8xf32>, vector<16x8xf32> -> vector<16x8xf32>
    %cst_27 = arith.constant dense<0.000000e+00> : vector<16x32xf32>
    %65 = tpu.matmul %64, %19, %cst_27 {dimension_numbers = #tpu.dot_dimension_numbers<[1], [0], [0], [1], [0, 0, 1, 1], [], []>} : vector<16x8xf32>, vector<8x32xf32>, vector<16x32xf32> -> vector<16x32xf32>
    %66 = arith.addf %9, %65 : vector<16x32xf32>
    %67 = vector.broadcast %15 : vector<1x32xf32> to vector<16x32xf32>
    %68 = arith.addf %66, %67 : vector<16x32xf32>
    %cst_28 = arith.constant dense<0.000000e+00> : vector<16xf32>
    %69 = vector.multi_reduction <add>, %68, %cst_28 [1] : vector<16x32xf32> to vector<16xf32>
    %70 = vector.shape_cast %69 : vector<16xf32> to vector<16x1xf32>
    %cst_29 = arith.constant 3.200000e+01 : f32
    %71 = vector.broadcast %cst_29 : f32 to vector<16x1xf32>
    %72 = arith.divf %70, %71 : vector<16x1xf32>
    %73 = vector.broadcast %72 : vector<16x1xf32> to vector<16x32xf32>
    %74 = arith.subf %68, %73 : vector<16x32xf32>
    %75 = vector.broadcast %72 : vector<16x1xf32> to vector<16x32xf32>
    %76 = arith.subf %68, %75 : vector<16x32xf32>
    %77 = arith.mulf %74, %76 : vector<16x32xf32>
    %cst_30 = arith.constant dense<0.000000e+00> : vector<16xf32>
    %78 = vector.multi_reduction <add>, %77, %cst_30 [1] : vector<16x32xf32> to vector<16xf32>
    %79 = vector.shape_cast %78 : vector<16xf32> to vector<16x1xf32>
    %cst_31 = arith.constant 3.200000e+01 : f32
    %80 = vector.broadcast %cst_31 : f32 to vector<16x1xf32>
    %81 = arith.divf %79, %80 : vector<16x1xf32>
    %82 = vector.broadcast %72 : vector<16x1xf32> to vector<16x32xf32>
    %83 = arith.subf %68, %82 : vector<16x32xf32>
    %cst_32 = arith.constant 9.99999974E-6 : f32
    %84 = vector.broadcast %cst_32 : f32 to vector<16x1xf32>
    %85 = arith.addf %81, %84 : vector<16x1xf32>
    %86 = math.rsqrt %85 : vector<16x1xf32>
    %87 = vector.broadcast %86 : vector<16x1xf32> to vector<16x32xf32>
    %88 = arith.mulf %83, %87 : vector<16x32xf32>
    %89 = vector.broadcast %13 : vector<1x32xf32> to vector<16x32xf32>
    %90 = arith.mulf %88, %89 : vector<16x32xf32>
    %91 = vector.broadcast %14 : vector<1x32xf32> to vector<16x32xf32>
    %92 = arith.addf %90, %91 : vector<16x32xf32>
    %cst_33 = arith.constant dense<0.000000e+00> : vector<16x128xf32>
    %93 = tpu.matmul %92, %20, %cst_33 {dimension_numbers = #tpu.dot_dimension_numbers<[1], [0], [0], [1], [0, 0, 1, 1], [], []>} : vector<16x32xf32>, vector<32x128xf32>, vector<16x128xf32> -> vector<16x128xf32>
    %94 = vector.broadcast %17 : vector<1x128xf32> to vector<16x128xf32>
    %95 = arith.addf %93, %94 : vector<16x128xf32>
    %cst_34 = arith.constant 5.000000e-01 : f32
    %96 = vector.broadcast %cst_34 : f32 to vector<16x128xf32>
    %97 = arith.mulf %96, %95 : vector<16x128xf32>
    %cst_35 = arith.constant 0.707106769 : f32
    %98 = vector.broadcast %cst_35 : f32 to vector<16x128xf32>
    %99 = arith.mulf %95, %98 : vector<16x128xf32>
    %cst_36 = arith.constant 0.000000e+00 : f32
    %100 = vector.broadcast %cst_36 : f32 to vector<16x128xf32>
    %101 = arith.cmpf oge, %99, %100 : vector<16x128xf32>
    %cst_37 = arith.constant 1.000000e+00 : f32
    %cst_38 = arith.constant -1.000000e+00 : f32
    %102 = vector.broadcast %cst_37 : f32 to vector<16x128xf32>
    %103 = vector.broadcast %cst_38 : f32 to vector<16x128xf32>
    %104 = arith.select %101, %102, %103 : vector<16x128xi1>, vector<16x128xf32>
    %105 = math.absf %99 : vector<16x128xf32>
    %cst_39 = arith.constant 0.327591091 : f32
    %106 = vector.broadcast %cst_39 : f32 to vector<16x128xf32>
    %107 = arith.mulf %106, %105 : vector<16x128xf32>
    %cst_40 = arith.constant 1.000000e+00 : f32
    %108 = vector.broadcast %cst_40 : f32 to vector<16x128xf32>
    %109 = arith.addf %108, %107 : vector<16x128xf32>
    %cst_41 = arith.constant 1.000000e+00 : f32
    %110 = vector.broadcast %cst_41 : f32 to vector<16x128xf32>
    %111 = arith.divf %110, %109 : vector<16x128xf32>
    %cst_42 = arith.constant 1.06140542 : f32
    %112 = vector.broadcast %cst_42 : f32 to vector<16x128xf32>
    %113 = arith.mulf %112, %111 : vector<16x128xf32>
    %cst_43 = arith.constant -1.45315206 : f32
    %114 = vector.broadcast %cst_43 : f32 to vector<16x128xf32>
    %115 = arith.addf %113, %114 : vector<16x128xf32>
    %116 = arith.mulf %115, %111 : vector<16x128xf32>
    %cst_44 = arith.constant 1.42141378 : f32
    %117 = vector.broadcast %cst_44 : f32 to vector<16x128xf32>
    %118 = arith.addf %116, %117 : vector<16x128xf32>
    %119 = arith.mulf %118, %111 : vector<16x128xf32>
    %cst_45 = arith.constant -0.284496725 : f32
    %120 = vector.broadcast %cst_45 : f32 to vector<16x128xf32>
    %121 = arith.addf %119, %120 : vector<16x128xf32>
    %122 = arith.mulf %121, %111 : vector<16x128xf32>
    %cst_46 = arith.constant 0.254829586 : f32
    %123 = vector.broadcast %cst_46 : f32 to vector<16x128xf32>
    %124 = arith.addf %122, %123 : vector<16x128xf32>
    %125 = arith.mulf %124, %111 : vector<16x128xf32>
    %cst_47 = arith.constant 0.000000e+00 : f32
    %126 = vector.broadcast %cst_47 : f32 to vector<16x128xf32>
    %127 = arith.subf %126, %105 : vector<16x128xf32>
    %128 = arith.mulf %127, %105 : vector<16x128xf32>
    %129 = math.exp %128 : vector<16x128xf32>
    %130 = arith.mulf %125, %129 : vector<16x128xf32>
    %cst_48 = arith.constant 1.000000e+00 : f32
    %131 = vector.broadcast %cst_48 : f32 to vector<16x128xf32>
    %132 = arith.subf %131, %130 : vector<16x128xf32>
    %133 = arith.mulf %104, %132 : vector<16x128xf32>
    %cst_49 = arith.constant 1.000000e+00 : f32
    %134 = vector.broadcast %cst_49 : f32 to vector<16x128xf32>
    %135 = arith.addf %134, %133 : vector<16x128xf32>
    %136 = arith.mulf %97, %135 : vector<16x128xf32>
    %cst_50 = arith.constant dense<0.000000e+00> : vector<16x32xf32>
    %137 = tpu.matmul %136, %21, %cst_50 {dimension_numbers = #tpu.dot_dimension_numbers<[1], [0], [0], [1], [0, 0, 1, 1], [], []>} : vector<16x128xf32>, vector<128x32xf32>, vector<16x32xf32> -> vector<16x32xf32>
    %138 = arith.addf %68, %137 : vector<16x32xf32>
    %139 = vector.broadcast %16 : vector<1x32xf32> to vector<16x32xf32>
    %140 = arith.addf %138, %139 : vector<16x32xf32>
    %c312 = arith.constant 312 : index
    %c0_51 = arith.constant 0 : index
    %141 = vector.load %arg1[%c312, %c0_51] : memref<560x128xf32, #tpu.memory_space<vmem>>, vector<1x32xf32>
    %c313 = arith.constant 313 : index
    %c0_52 = arith.constant 0 : index
    %142 = vector.load %arg1[%c313, %c0_52] : memref<560x128xf32, #tpu.memory_space<vmem>>, vector<1x32xf32>
    %c314 = arith.constant 314 : index
    %c0_53 = arith.constant 0 : index
    %143 = vector.load %arg1[%c314, %c0_53] : memref<560x128xf32, #tpu.memory_space<vmem>>, vector<1x32xf32>
    %c315 = arith.constant 315 : index
    %c0_54 = arith.constant 0 : index
    %144 = vector.load %arg1[%c315, %c0_54] : memref<560x128xf32, #tpu.memory_space<vmem>>, vector<1x32xf32>
    %c316 = arith.constant 316 : index
    %c0_55 = arith.constant 0 : index
    %145 = vector.load %arg1[%c316, %c0_55] : memref<560x128xf32, #tpu.memory_space<vmem>>, vector<1x32xf32>
    %c317 = arith.constant 317 : index
    %c0_56 = arith.constant 0 : index
    %146 = vector.load %arg1[%c317, %c0_56] : memref<560x128xf32, #tpu.memory_space<vmem>>, vector<1x32xf32>
    %c318 = arith.constant 318 : index
    %c0_57 = arith.constant 0 : index
    %147 = vector.load %arg1[%c318, %c0_57] : memref<560x128xf32, #tpu.memory_space<vmem>>, vector<1x128xf32>
    %c320 = arith.constant 320 : index
    %c0_58 = arith.constant 0 : index
    %148 = vector.load %arg1[%c320, %c0_58] : memref<560x128xf32, #tpu.memory_space<vmem>>, vector<32x24xf32>
    %c352 = arith.constant 352 : index
    %c0_59 = arith.constant 0 : index
    %149 = vector.load %arg1[%c352, %c0_59] : memref<560x128xf32, #tpu.memory_space<vmem>>, vector<8x32xf32>
    %c360 = arith.constant 360 : index
    %c0_60 = arith.constant 0 : index
    %150 = vector.load %arg1[%c360, %c0_60] : memref<560x128xf32, #tpu.memory_space<vmem>>, vector<32x128xf32>
    %c392 = arith.constant 392 : index
    %c0_61 = arith.constant 0 : index
    %151 = vector.load %arg1[%c392, %c0_61] : memref<560x128xf32, #tpu.memory_space<vmem>>, vector<128x32xf32>
    %cst_62 = arith.constant dense<0.000000e+00> : vector<16xf32>
    %152 = vector.multi_reduction <add>, %140, %cst_62 [1] : vector<16x32xf32> to vector<16xf32>
    %153 = vector.shape_cast %152 : vector<16xf32> to vector<16x1xf32>
    %cst_63 = arith.constant 3.200000e+01 : f32
    %154 = vector.broadcast %cst_63 : f32 to vector<16x1xf32>
    %155 = arith.divf %153, %154 : vector<16x1xf32>
    %156 = vector.broadcast %155 : vector<16x1xf32> to vector<16x32xf32>
    %157 = arith.subf %140, %156 : vector<16x32xf32>
    %158 = vector.broadcast %155 : vector<16x1xf32> to vector<16x32xf32>
    %159 = arith.subf %140, %158 : vector<16x32xf32>
    %160 = arith.mulf %157, %159 : vector<16x32xf32>
    %cst_64 = arith.constant dense<0.000000e+00> : vector<16xf32>
    %161 = vector.multi_reduction <add>, %160, %cst_64 [1] : vector<16x32xf32> to vector<16xf32>
    %162 = vector.shape_cast %161 : vector<16xf32> to vector<16x1xf32>
    %cst_65 = arith.constant 3.200000e+01 : f32
    %163 = vector.broadcast %cst_65 : f32 to vector<16x1xf32>
    %164 = arith.divf %162, %163 : vector<16x1xf32>
    %165 = vector.broadcast %155 : vector<16x1xf32> to vector<16x32xf32>
    %166 = arith.subf %140, %165 : vector<16x32xf32>
    %cst_66 = arith.constant 9.99999974E-6 : f32
    %167 = vector.broadcast %cst_66 : f32 to vector<16x1xf32>
    %168 = arith.addf %164, %167 : vector<16x1xf32>
    %169 = math.rsqrt %168 : vector<16x1xf32>
    %170 = vector.broadcast %169 : vector<16x1xf32> to vector<16x32xf32>
    %171 = arith.mulf %166, %170 : vector<16x32xf32>
    %172 = vector.broadcast %141 : vector<1x32xf32> to vector<16x32xf32>
    %173 = arith.mulf %171, %172 : vector<16x32xf32>
    %174 = vector.broadcast %142 : vector<1x32xf32> to vector<16x32xf32>
    %175 = arith.addf %173, %174 : vector<16x32xf32>
    %cst_67 = arith.constant dense<0.000000e+00> : vector<16x24xf32>
    %176 = tpu.matmul %175, %148, %cst_67 {dimension_numbers = #tpu.dot_dimension_numbers<[1], [0], [0], [1], [0, 0, 1, 1], [], []>} : vector<16x32xf32>, vector<32x24xf32>, vector<16x24xf32> -> vector<16x24xf32>
    %177 = vector.extract_strided_slice %176 {offsets = [0, 0], sizes = [16, 8], strides = [1, 1]} : vector<16x24xf32> to vector<16x8xf32>
    %178 = vector.extract_strided_slice %176 {offsets = [0, 8], sizes = [16, 8], strides = [1, 1]} : vector<16x24xf32> to vector<16x8xf32>
    %179 = vector.extract_strided_slice %176 {offsets = [0, 16], sizes = [16, 8], strides = [1, 1]} : vector<16x24xf32> to vector<16x8xf32>
    %cst_68 = arith.constant dense<0.000000e+00> : vector<16x16xf32>
    %180 = tpu.matmul %177, %178, %cst_68 {dimension_numbers = #tpu.dot_dimension_numbers<[1], [1], [0], [0], [0, 0, 1, 0], [], []>} : vector<16x8xf32>, vector<16x8xf32>, vector<16x16xf32> -> vector<16x16xf32>
    %cst_69 = arith.constant 0.353553385 : f32
    %181 = vector.broadcast %cst_69 : f32 to vector<16x16xf32>
    %182 = arith.mulf %180, %181 : vector<16x16xf32>
    %183 = arith.addf %182, %10 : vector<16x16xf32>
    %cst_70 = arith.constant dense<0xFF800000> : vector<16xf32>
    %184 = vector.multi_reduction <maximumf>, %183, %cst_70 [1] : vector<16x16xf32> to vector<16xf32>
    %185 = vector.shape_cast %184 : vector<16xf32> to vector<16x1xf32>
    %186 = vector.broadcast %185 : vector<16x1xf32> to vector<16x16xf32>
    %187 = arith.subf %183, %186 : vector<16x16xf32>
    %188 = math.exp %187 : vector<16x16xf32>
    %cst_71 = arith.constant dense<0.000000e+00> : vector<16xf32>
    %189 = vector.multi_reduction <add>, %188, %cst_71 [1] : vector<16x16xf32> to vector<16xf32>
    %190 = vector.shape_cast %189 : vector<16xf32> to vector<16x1xf32>
    %191 = tpu.reciprocal %190 {approx = true} : vector<16x1xf32> -> vector<16x1xf32>
    %192 = vector.broadcast %191 : vector<16x1xf32> to vector<16x16xf32>
    %193 = arith.mulf %188, %192 : vector<16x16xf32>
    %cst_72 = arith.constant dense<0.000000e+00> : vector<16x8xf32>
    %194 = tpu.matmul %193, %179, %cst_72 {dimension_numbers = #tpu.dot_dimension_numbers<[1], [0], [0], [1], [0, 0, 1, 1], [], []>} : vector<16x16xf32>, vector<16x8xf32>, vector<16x8xf32> -> vector<16x8xf32>
    %cst_73 = arith.constant dense<0.000000e+00> : vector<16x32xf32>
    %195 = tpu.matmul %194, %149, %cst_73 {dimension_numbers = #tpu.dot_dimension_numbers<[1], [0], [0], [1], [0, 0, 1, 1], [], []>} : vector<16x8xf32>, vector<8x32xf32>, vector<16x32xf32> -> vector<16x32xf32>
    %196 = arith.addf %140, %195 : vector<16x32xf32>
    %197 = vector.broadcast %145 : vector<1x32xf32> to vector<16x32xf32>
    %198 = arith.addf %196, %197 : vector<16x32xf32>
    %cst_74 = arith.constant dense<0.000000e+00> : vector<16xf32>
    %199 = vector.multi_reduction <add>, %198, %cst_74 [1] : vector<16x32xf32> to vector<16xf32>
    %200 = vector.shape_cast %199 : vector<16xf32> to vector<16x1xf32>
    %cst_75 = arith.constant 3.200000e+01 : f32
    %201 = vector.broadcast %cst_75 : f32 to vector<16x1xf32>
    %202 = arith.divf %200, %201 : vector<16x1xf32>
    %203 = vector.broadcast %202 : vector<16x1xf32> to vector<16x32xf32>
    %204 = arith.subf %198, %203 : vector<16x32xf32>
    %205 = vector.broadcast %202 : vector<16x1xf32> to vector<16x32xf32>
    %206 = arith.subf %198, %205 : vector<16x32xf32>
    %207 = arith.mulf %204, %206 : vector<16x32xf32>
    %cst_76 = arith.constant dense<0.000000e+00> : vector<16xf32>
    %208 = vector.multi_reduction <add>, %207, %cst_76 [1] : vector<16x32xf32> to vector<16xf32>
    %209 = vector.shape_cast %208 : vector<16xf32> to vector<16x1xf32>
    %cst_77 = arith.constant 3.200000e+01 : f32
    %210 = vector.broadcast %cst_77 : f32 to vector<16x1xf32>
    %211 = arith.divf %209, %210 : vector<16x1xf32>
    %212 = vector.broadcast %202 : vector<16x1xf32> to vector<16x32xf32>
    %213 = arith.subf %198, %212 : vector<16x32xf32>
    %cst_78 = arith.constant 9.99999974E-6 : f32
    %214 = vector.broadcast %cst_78 : f32 to vector<16x1xf32>
    %215 = arith.addf %211, %214 : vector<16x1xf32>
    %216 = math.rsqrt %215 : vector<16x1xf32>
    %217 = vector.broadcast %216 : vector<16x1xf32> to vector<16x32xf32>
    %218 = arith.mulf %213, %217 : vector<16x32xf32>
    %219 = vector.broadcast %143 : vector<1x32xf32> to vector<16x32xf32>
    %220 = arith.mulf %218, %219 : vector<16x32xf32>
    %221 = vector.broadcast %144 : vector<1x32xf32> to vector<16x32xf32>
    %222 = arith.addf %220, %221 : vector<16x32xf32>
    %cst_79 = arith.constant dense<0.000000e+00> : vector<16x128xf32>
    %223 = tpu.matmul %222, %150, %cst_79 {dimension_numbers = #tpu.dot_dimension_numbers<[1], [0], [0], [1], [0, 0, 1, 1], [], []>} : vector<16x32xf32>, vector<32x128xf32>, vector<16x128xf32> -> vector<16x128xf32>
    %224 = vector.broadcast %147 : vector<1x128xf32> to vector<16x128xf32>
    %225 = arith.addf %223, %224 : vector<16x128xf32>
    %cst_80 = arith.constant 5.000000e-01 : f32
    %226 = vector.broadcast %cst_80 : f32 to vector<16x128xf32>
    %227 = arith.mulf %226, %225 : vector<16x128xf32>
    %cst_81 = arith.constant 0.707106769 : f32
    %228 = vector.broadcast %cst_81 : f32 to vector<16x128xf32>
    %229 = arith.mulf %225, %228 : vector<16x128xf32>
    %cst_82 = arith.constant 0.000000e+00 : f32
    %230 = vector.broadcast %cst_82 : f32 to vector<16x128xf32>
    %231 = arith.cmpf oge, %229, %230 : vector<16x128xf32>
    %cst_83 = arith.constant 1.000000e+00 : f32
    %cst_84 = arith.constant -1.000000e+00 : f32
    %232 = vector.broadcast %cst_83 : f32 to vector<16x128xf32>
    %233 = vector.broadcast %cst_84 : f32 to vector<16x128xf32>
    %234 = arith.select %231, %232, %233 : vector<16x128xi1>, vector<16x128xf32>
    %235 = math.absf %229 : vector<16x128xf32>
    %cst_85 = arith.constant 0.327591091 : f32
    %236 = vector.broadcast %cst_85 : f32 to vector<16x128xf32>
    %237 = arith.mulf %236, %235 : vector<16x128xf32>
    %cst_86 = arith.constant 1.000000e+00 : f32
    %238 = vector.broadcast %cst_86 : f32 to vector<16x128xf32>
    %239 = arith.addf %238, %237 : vector<16x128xf32>
    %cst_87 = arith.constant 1.000000e+00 : f32
    %240 = vector.broadcast %cst_87 : f32 to vector<16x128xf32>
    %241 = arith.divf %240, %239 : vector<16x128xf32>
    %cst_88 = arith.constant 1.06140542 : f32
    %242 = vector.broadcast %cst_88 : f32 to vector<16x128xf32>
    %243 = arith.mulf %242, %241 : vector<16x128xf32>
    %cst_89 = arith.constant -1.45315206 : f32
    %244 = vector.broadcast %cst_89 : f32 to vector<16x128xf32>
    %245 = arith.addf %243, %244 : vector<16x128xf32>
    %246 = arith.mulf %245, %241 : vector<16x128xf32>
    %cst_90 = arith.constant 1.42141378 : f32
    %247 = vector.broadcast %cst_90 : f32 to vector<16x128xf32>
    %248 = arith.addf %246, %247 : vector<16x128xf32>
    %249 = arith.mulf %248, %241 : vector<16x128xf32>
    %cst_91 = arith.constant -0.284496725 : f32
    %250 = vector.broadcast %cst_91 : f32 to vector<16x128xf32>
    %251 = arith.addf %249, %250 : vector<16x128xf32>
    %252 = arith.mulf %251, %241 : vector<16x128xf32>
    %cst_92 = arith.constant 0.254829586 : f32
    %253 = vector.broadcast %cst_92 : f32 to vector<16x128xf32>
    %254 = arith.addf %252, %253 : vector<16x128xf32>
    %255 = arith.mulf %254, %241 : vector<16x128xf32>
    %cst_93 = arith.constant 0.000000e+00 : f32
    %256 = vector.broadcast %cst_93 : f32 to vector<16x128xf32>
    %257 = arith.subf %256, %235 : vector<16x128xf32>
    %258 = arith.mulf %257, %235 : vector<16x128xf32>
    %259 = math.exp %258 : vector<16x128xf32>
    %260 = arith.mulf %255, %259 : vector<16x128xf32>
    %cst_94 = arith.constant 1.000000e+00 : f32
    %261 = vector.broadcast %cst_94 : f32 to vector<16x128xf32>
    %262 = arith.subf %261, %260 : vector<16x128xf32>
    %263 = arith.mulf %234, %262 : vector<16x128xf32>
    %cst_95 = arith.constant 1.000000e+00 : f32
    %264 = vector.broadcast %cst_95 : f32 to vector<16x128xf32>
    %265 = arith.addf %264, %263 : vector<16x128xf32>
    %266 = arith.mulf %227, %265 : vector<16x128xf32>
    %cst_96 = arith.constant dense<0.000000e+00> : vector<16x32xf32>
    %267 = tpu.matmul %266, %151, %cst_96 {dimension_numbers = #tpu.dot_dimension_numbers<[1], [0], [0], [1], [0, 0, 1, 1], [], []>} : vector<16x128xf32>, vector<128x32xf32>, vector<16x32xf32> -> vector<16x32xf32>
    %268 = arith.addf %198, %267 : vector<16x32xf32>
    %269 = vector.broadcast %146 : vector<1x32xf32> to vector<16x32xf32>
    %270 = arith.addf %268, %269 : vector<16x32xf32>
    %c96 = arith.constant 96 : index
    %c0_97 = arith.constant 0 : index
    %271 = vector.load %arg1[%c96, %c0_97] : memref<560x128xf32, #tpu.memory_space<vmem>>, vector<8x16xf32>
    %cst_98 = arith.constant dense<0.000000e+00> : vector<8x32xf32>
    %272 = tpu.matmul %271, %270, %cst_98 {dimension_numbers = #tpu.dot_dimension_numbers<[1], [0], [0], [1], [0, 0, 1, 1], [], []>} : vector<8x16xf32>, vector<16x32xf32>, vector<8x32xf32> -> vector<8x32xf32>
    %c520 = arith.constant 520 : index
    %c0_99 = arith.constant 0 : index
    %273 = vector.load %arg1[%c520, %c0_99] : memref<560x128xf32, #tpu.memory_space<vmem>>, vector<1x32xf32>
    %c521 = arith.constant 521 : index
    %c0_100 = arith.constant 0 : index
    %274 = vector.load %arg1[%c521, %c0_100] : memref<560x128xf32, #tpu.memory_space<vmem>>, vector<1x32xf32>
    %cst_101 = arith.constant dense<0.000000e+00> : vector<8xf32>
    %275 = vector.multi_reduction <add>, %272, %cst_101 [1] : vector<8x32xf32> to vector<8xf32>
    %276 = vector.shape_cast %275 : vector<8xf32> to vector<8x1xf32>
    %cst_102 = arith.constant 3.200000e+01 : f32
    %277 = vector.broadcast %cst_102 : f32 to vector<8x1xf32>
    %278 = arith.divf %276, %277 : vector<8x1xf32>
    %279 = vector.broadcast %278 : vector<8x1xf32> to vector<8x32xf32>
    %280 = arith.subf %272, %279 : vector<8x32xf32>
    %281 = vector.broadcast %278 : vector<8x1xf32> to vector<8x32xf32>
    %282 = arith.subf %272, %281 : vector<8x32xf32>
    %283 = arith.mulf %280, %282 : vector<8x32xf32>
    %cst_103 = arith.constant dense<0.000000e+00> : vector<8xf32>
    %284 = vector.multi_reduction <add>, %283, %cst_103 [1] : vector<8x32xf32> to vector<8xf32>
    %285 = vector.shape_cast %284 : vector<8xf32> to vector<8x1xf32>
    %cst_104 = arith.constant 3.200000e+01 : f32
    %286 = vector.broadcast %cst_104 : f32 to vector<8x1xf32>
    %287 = arith.divf %285, %286 : vector<8x1xf32>
    %288 = vector.broadcast %278 : vector<8x1xf32> to vector<8x32xf32>
    %289 = arith.subf %272, %288 : vector<8x32xf32>
    %cst_105 = arith.constant 9.99999974E-6 : f32
    %290 = vector.broadcast %cst_105 : f32 to vector<8x1xf32>
    %291 = arith.addf %287, %290 : vector<8x1xf32>
    %292 = math.rsqrt %291 : vector<8x1xf32>
    %293 = vector.broadcast %292 : vector<8x1xf32> to vector<8x32xf32>
    %294 = arith.mulf %289, %293 : vector<8x32xf32>
    %295 = vector.broadcast %273 : vector<1x32xf32> to vector<8x32xf32>
    %296 = arith.mulf %294, %295 : vector<8x32xf32>
    %297 = vector.broadcast %274 : vector<1x32xf32> to vector<8x32xf32>
    %298 = arith.addf %296, %297 : vector<8x32xf32>
    %c528 = arith.constant 528 : index
    %c0_106 = arith.constant 0 : index
    %299 = vector.load %arg1[%c528, %c0_106] : memref<560x128xf32, #tpu.memory_space<vmem>>, vector<32x128xf32>
    %cst_107 = arith.constant dense<0.000000e+00> : vector<8x128xf32>
    %300 = tpu.matmul %298, %299, %cst_107 {dimension_numbers = #tpu.dot_dimension_numbers<[1], [0], [0], [1], [0, 0, 1, 1], [], []>} : vector<8x32xf32>, vector<32x128xf32>, vector<8x128xf32> -> vector<8x128xf32>
    %c0_108 = arith.constant 0 : index
    %c0_109 = arith.constant 0 : index
    %301 = vector.load %arg2[%c0_108, %c0_109] : memref<8x128xf32, #tpu.memory_space<vmem>>, vector<8x128xf32>
    tpu.vector_store %arg2[%c0_108, %c0_109], %300 {strides = array<i32>} : memref<8x128xf32, #tpu.memory_space<vmem>>, vector<8x128xf32>,
    return
  }
}

</mosaic_0001>

<llo_original>
// kernel: forward.1
$region0: #{forward.1}
  #allocation0 [shape = 'u32[]', space=smem, size = 0x4, offset = 0x4, fixed_abs, tag = 'smem constant byte address 0x4 - core index']
  #allocation1 [shape = 'u32[144,128]{1,0:T(1,128)}', space=vmem, size = 0x12000, scoped, tag = 'internal scratch']
  %s0 = inlined_call_operand.vmem [shape: s32[16,1], index: 0, kind: input, shape index: {}]
  %s1 = inlined_call_operand.hbm [shape: f32[560,128], index: 1, kind: input, shape index: {}]
  %s2 = inlined_call_operand.vmem [shape: f32[8,128], index: 2, kind: output, shape index: {}]
  %s3 = sld [smem:[#allocation0]]
  $region22: #{forward.1} parent=0
    _
  %s5 = ssub.s32 1, %s3
  %s6 = scalar_select 0, %s5, %s3
  $region1: #{forward.1} parent=0
    #allocation2 [shape = 'u8[286720]{0}', space=vmem, size = 0x46000, scoped, tag = 'input window, operand 1, single buffered']
    #allocation3 [shape = 's32[1]{0}', space=sflag, size = 0x4, scoped, tag = 'scoped memory for forward.1']
    %7 = vsyncpa [#allocation3], 0
    // Predicated region
    $region2: #{forward.1} parent=1 // pred_check
      _
    $region3: #{forward.1} parent=1 // pred_check_branch
      %9 = sbr.rel (0) target = $region5
    $region4: #{forward.1} parent=1 // pred_region
      _
    $region5: #{forward.1} parent=1 // pred_fallthru
      _
    // Predicated region
    $region6: #{forward.1} parent=1 // pred_check
      _
    $region7: #{forward.1} parent=1 // pred_check_branch
      %11 = sbr.rel (0) target = $region9
    $region8: #{forward.1} parent=1 // pred_region
      %s13 = ssub.s32 8960, 8960
      %14 = vsyncadd [#allocation3], %s13
      %s15 = sshll.u32 [#allocation2], 4
      %s16 = int_to_ptr.vmem [resolvable:$true] %s15
      %21 = dma.hbm_to_vmem [thread:$0]  %s1, 8960, %s16, [#allocation3], 128, 128, 8
    $region9: #{forward.1} parent=1 // pred_fallthru
      _
    // Predicated region
    $region10: #{forward.1} parent=1 // pred_check
      _
    $region11: #{forward.1} parent=1 // pred_check_branch
      %23 = sbr.rel (0) target = $region13
    $region12: #{forward.1} parent=1 // pred_region
      %24 = dma.done [#allocation3], 8960
    $region13: #{forward.1} parent=1 // pred_fallthru
      _
    %v25 = vlaneseq
    %v26 = vand.u32 %v25, 127
    %v27 = vld [vmem:[%s0] sm:$0xff]
    %v28 = vld [vmem:[%s0 + $0x8] sm:$0xff]
    %29 = vset.pattern.permute.xlu0 0
    %30 = vperm.xlu0 %29, %v27
    %v31 = vpop.permute.xlu0 %30
    %32 = vset.pattern.permute.xlu0 0
    %33 = vperm.xlu0 %32, %v28
    %v34 = vpop.permute.xlu0 %33
    %vm35 = vcmp.eq.s32.totalorder %v31, %v26
    %vm36 = vcmp.eq.s32.totalorder %v34, %v26
    %v37 = vsel %vm35, 1, 0
    %v38 = vsel %vm36, 1, 0
    %v39 = vcvt.s32.f32 %v37
    %v40 = vcvt.s32.f32 %v38
    %v41 = vld [vmem:[#allocation2] sm:$0xff]
    %v42 = vld [vmem:[#allocation2 + $0x8] sm:$0xff]
    %v43 = vld [vmem:[#allocation2 + $0x10] sm:$0xff]
    %v44 = vld [vmem:[#allocation2 + $0x18] sm:$0xff]
    %v45 = vld [vmem:[#allocation2 + $0x20] sm:$0xff]
    %v46 = vld [vmem:[#allocation2 + $0x28] sm:$0xff]
    %v47 = vld [vmem:[#allocation2 + $0x30] sm:$0xff]
    %v48 = vld [vmem:[#allocation2 + $0x38] sm:$0xff]
    %v49 = vld [vmem:[#allocation2 + $0x40] sm:$0xff]
    %v50 = vld [vmem:[#allocation2 + $0x48] sm:$0xff]
    %vm51 = vcmask 523264
    %v53 = vsel %vm51, %v39, 0
    %v56 = vsel %vm51, %v40, 0
    %58 = vmatprep.subr.mxu0 0.0
    %59 = vmatpush1.msra.mxu0 %v41
    %60 = vmatprep.subr.mxu0 0.0
    %61 = vmatpush1.msra.mxu0 %v42
    %62 = vmatprep.subr.mxu0 0.0
    %63 = vmatpush1.msra.mxu0 %v43
    %64 = vmatprep.subr.mxu0 0.0
    %65 = vmatpush1.msra.mxu0 %v44
    %66 = vmatprep.subr.mxu0 0.0
    %67 = vmatpush1.msra.mxu0 %v45
    %68 = vmatprep.subr.mxu0 0.0
    %69 = vmatpush1.msra.mxu0 %v46
    %70 = vmatprep.subr.mxu0 0.0
    %71 = vmatpush1.msra.mxu0 %v47
    %72 = vmatprep.subr.mxu0 0.0
    %73 = vmatpush1.msra.mxu0 %v48
    %74 = vmatprep.subr.mxu0 0.0
    %75 = vmatpush1.msra.mxu0 0.0
    %76 = vmatprep.subr.mxu0 0.0
    %77 = vmatpush1.msra.mxu0 0.0
    %78 = vmatprep.subr.mxu0 0.0
    %79 = vmatpush1.msra.mxu0 0.0
    %80 = vmatprep.subr.mxu0 0.0
    %81 = vmatpush1.msra.mxu0 0.0
    %82 = vmatprep.subr.mxu0 0.0
    %83 = vmatpush1.msra.mxu0 0.0
    %84 = vmatprep.subr.mxu0 0.0
    %85 = vmatpush1.msra.mxu0 0.0
    %86 = vmatprep.subr.mxu0 0.0
    %87 = vmatpush1.msra.mxu0 0.0
    %88 = vmatprep.subr.mxu0 0.0
    %89 = vmatpush1.msra.mxu0 0.0
    %90 = vmatprep.subr.mxu0 0.0
    %91 = vmatpush1.msra.mxu0 0.0
    %92 = vmatprep.subr.mxu0 0.0
    %93 = vmatpush1.msra.mxu0 0.0
    %94 = vmatprep.subr.mxu0 0.0
    %95 = vmatpush1.msra.mxu0 0.0
    %96 = vmatprep.subr.mxu0 0.0
    %97 = vmatpush1.msra.mxu0 0.0
    %98 = vmatprep.subr.mxu0 0.0
    %99 = vmatpush1.msra.mxu0 0.0
    %100 = vmatprep.subr.mxu0 0.0
    %101 = vmatpush1.msra.mxu0 0.0
    %102 = vmatprep.subr.mxu0 0.0
    %103 = vmatpush1.msra.mxu0 0.0
    %104 = vmatprep.subr.mxu0 0.0
    %105 = vmatpush1.msra.mxu0 0.0
    %106 = vmatprep.subr.mxu0 0.0
    %107 = vmatpush1.msra.mxu0 0.0
    %108 = vmatprep.subr.mxu0 0.0
    %109 = vmatpush1.msra.mxu0 0.0
    %110 = vmatprep.subr.mxu0 0.0
    %111 = vmatpush1.msra.mxu0 0.0
    %112 = vmatprep.subr.mxu0 0.0
    %113 = vmatpush1.msra.mxu0 0.0
    %114 = vmatprep.subr.mxu0 0.0
    %115 = vmatpush1.msra.mxu0 0.0
    %116 = vmatprep.subr.mxu0 0.0
    %117 = vmatpush1.msra.mxu0 0.0
    %118 = vmatprep.subr.mxu0 0.0
    %119 = vmatpush1.msra.mxu0 0.0
    %120 = vmatprep.subr.mxu0 0.0
    %121 = vmatpush1.msra.mxu0 0.0
    %122 = vmatprep.mubr.f32.mxu0 0.0
    %123 = vmatmul.mubr.f32.gmra.mrb[0].mxu0 %v53
    %v124 = vpop.f32.mrb[0].mxu0
    %v125 = vadd.f32 %v49, %v124
    %v126 = vpop.f32.mrb[0].mxu0
    %127 = vmatprep.mubr.f32.mxu0 0.0
    %128 = vmatmul.mubr.f32.gmra.mrb[0].mxu0 %v56
    %v129 = vpop.f32.mrb[0].mxu0
    %v130 = vadd.f32 %v50, %v129
    %v131 = vpop.f32.mrb[0].mxu0
    %132 = vdwg.mxu0
    %v133 = vld [vmem:[#allocation2 + $0x50] sm:$0xff]
    %v134 = vld [vmem:[#allocation2 + $0x58] sm:$0xff]
    %v135 = vld [vmem:[#allocation2 + $0x68] sm:$0x1]
    %v136 = vld [vmem:[#allocation2 + $0x69] sm:$0x1]
    %v137 = vld [vmem:[#allocation2 + $0x6a] sm:$0x1]
    %v138 = vld [vmem:[#allocation2 + $0x6b] sm:$0x1]
    %v139 = vld [vmem:[#allocation2 + $0x6c] sm:$0x1]
    %v140 = vld [vmem:[#allocation2 + $0x6d] sm:$0x1]
    %v141 = vld [vmem:[#allocation2 + $0x6e] sm:$0x1]
    %v142 = vld [vmem:[#allocation2 + $0x70] sm:$0xff]
    %v143 = vld [vmem:[#allocation2 + $0x78] sm:$0xff]
    %v144 = vld [vmem:[#allocation2 + $0x80] sm:$0xff]
    %v145 = vld [vmem:[#allocation2 + $0x88] sm:$0xff]
    %v146 = vld [vmem:[#allocation2 + $0x90] sm:$0xff]
    %v147 = vld [vmem:[#allocation2 + $0x98] sm:$0xff]
    %v148 = vld [vmem:[#allocation2 + $0xa0] sm:$0xff]
    %v149 = vld [vmem:[#allocation2 + $0xa8] sm:$0xff]
    %v150 = vld [vmem:[#allocation2 + $0xb0] sm:$0xff]
    %v151 = vld [vmem:[#allocation2 + $0xb8] sm:$0xff]
    %v152 = vld [vmem:[#allocation2 + $0xc0] sm:$0xff]
    %v153 = vld [vmem:[#allocation2 + $0xc8] sm:$0xff]
    %v154 = vld [vmem:[#allocation2 + $0xd0] sm:$0xff]
    %v155 = vld [vmem:[#allocation2 + $0xd8] sm:$0xff]
    %v156 = vld [vmem:[#allocation2 + $0xe0] sm:$0xff]
    %v157 = vld [vmem:[#allocation2 + $0xe8] sm:$0xff]
    %v158 = vld [vmem:[#allocation2 + $0xf0] sm:$0xff]
    %v159 = vld [vmem:[#allocation2 + $0xf8] sm:$0xff]
    %v160 = vld [vmem:[#allocation2 + $0x100] sm:$0xff]
    %v161 = vld [vmem:[#allocation2 + $0x108] sm:$0xff]
    %v162 = vld [vmem:[#allocation2 + $0x110] sm:$0xff]
    %v163 = vld [vmem:[#allocation2 + $0x118] sm:$0xff]
    %v164 = vld [vmem:[#allocation2 + $0x120] sm:$0xff]
    %v165 = vld [vmem:[#allocation2 + $0x128] sm:$0xff]
    %v166 = vld [vmem:[#allocation2 + $0x130] sm:$0xff]
    %vm167 = vcmask 261120
    %v168 = vsel %vm167, %v125, 0.0
    %169 = vadd.xlane.f32.xlu0 %v168
    %v170 = vpop.xlane.xlu0 %169
    %v171 = vsel %vm167, %v130, 0.0
    %172 = vadd.xlane.f32.xlu0 %v171
    %v173 = vpop.xlane.xlu0 %172
    %v174 = vrcp.pop 32.0
    %v175 = vmul.f32 %v170, %v174
    %v176 = vmul.f32 %v173, %v174
    %v177 = vsub.f32 %v125, %v175
    %v178 = vsub.f32 %v130, %v176
    %v179 = vmul.f32 %v177, %v177
    %v180 = vmul.f32 %v178, %v178
    %v181 = vsel %vm167, %v179, 0.0
    %182 = vadd.xlane.f32.xlu0 %v181
    %v183 = vpop.xlane.xlu0 %182
    %v184 = vsel %vm167, %v180, 0.0
    %185 = vadd.xlane.f32.xlu0 %v184
    %v186 = vpop.xlane.xlu0 %185
    %v187 = vmul.f32 %v183, %v174
    %v188 = vmul.f32 %v186, %v174
    %v189 = vadd.f32 %v187, 1e-05
    %v190 = vadd.f32 %v188, 1e-05
    %v191 = vrsqrt.pop %v189
    %v192 = vrsqrt.pop %v190
    %v193 = vmul.f32 %v177, %v191
    %v194 = vmul.f32 %v178, %v192
    %v195 = vlaneseq
    %v196 = vshrl.u32 %v195, 7
    %v197 = vsub.s32 0, %v196
    %v198 = vrot.slane %v135, %v197
    %v199 = vmul.f32 %v193, %v198
    %v200 = vmul.f32 %v194, %v198
    %v201 = vlaneseq
    %v202 = vshrl.u32 %v201, 7
    %v203 = vsub.s32 0, %v202
    %v204 = vrot.slane %v136, %v203
    %v205 = vadd.f32 %v199, %v204
    %v206 = vadd.f32 %v200, %v204
    %v208 = vsel %vm167, %v205, 0
    %v211 = vsel %vm167, %v206, 0
    %213 = vmatprep.subr.mxu0 0.0
    %214 = vmatpush1.msra.mxu0 %v142
    %215 = vmatprep.subr.mxu0 0.0
    %216 = vmatpush1.msra.mxu0 %v143
    %217 = vmatprep.subr.mxu0 0.0
    %218 = vmatpush1.msra.mxu0 %v144
    %219 = vmatprep.subr.mxu0 0.0
    %220 = vmatpush1.msra.mxu0 %v145
    %221 = vmatprep.subr.mxu0 0.0
    %222 = vmatpush1.msra.mxu0 0.0
    %223 = vmatprep.subr.mxu0 0.0
    %224 = vmatpush1.msra.mxu0 0.0
    %225 = vmatprep.subr.mxu0 0.0
    %226 = vmatpush1.msra.mxu0 0.0
    %227 = vmatprep.subr.mxu0 0.0
    %228 = vmatpush1.msra.mxu0 0.0
    %229 = vmatprep.subr.mxu0 0.0
    %230 = vmatpush1.msra.mxu0 0.0
    %231 = vmatprep.subr.mxu0 0.0
    %232 = vmatpush1.msra.mxu0 0.0
    %233 = vmatprep.subr.mxu0 0.0
    %234 = vmatpush1.msra.mxu0 0.0
    %235 = vmatprep.subr.mxu0 0.0
    %236 = vmatpush1.msra.mxu0 0.0
    %237 = vmatprep.subr.mxu0 0.0
    %238 = vmatpush1.msra.mxu0 0.0
    %239 = vmatprep.subr.mxu0 0.0
    %240 = vmatpush1.msra.mxu0 0.0
    %241 = vmatprep.subr.mxu0 0.0
    %242 = vmatpush1.msra.mxu0 0.0
    %243 = vmatprep.subr.mxu0 0.0
    %244 = vmatpush1.msra.mxu0 0.0
    %245 = vmatprep.subr.mxu0 0.0
    %246 = vmatpush1.msra.mxu0 0.0
    %247 = vmatprep.subr.mxu0 0.0
    %248 = vmatpush1.msra.mxu0 0.0
    %249 = vmatprep.subr.mxu0 0.0
    %250 = vmatpush1.msra.mxu0 0.0
    %251 = vmatprep.subr.mxu0 0.0
    %252 = vmatpush1.msra.mxu0 0.0
    %253 = vmatprep.subr.mxu0 0.0
    %254 = vmatpush1.msra.mxu0 0.0
    %255 = vmatprep.subr.mxu0 0.0
    %256 = vmatpush1.msra.mxu0 0.0
    %257 = vmatprep.subr.mxu0 0.0
    %258 = vmatpush1.msra.mxu0 0.0
    %259 = vmatprep.subr.mxu0 0.0
    %260 = vmatpush1.msra.mxu0 0.0
    %261 = vmatprep.subr.mxu0 0.0
    %262 = vmatpush1.msra.mxu0 0.0
    %263 = vmatprep.subr.mxu0 0.0
    %264 = vmatpush1.msra.mxu0 0.0
    %265 = vmatprep.subr.mxu0 0.0
    %266 = vmatpush1.msra.mxu0 0.0
    %267 = vmatprep.subr.mxu0 0.0
    %268 = vmatpush1.msra.mxu0 0.0
    %269 = vmatprep.subr.mxu0 0.0
    %270 = vmatpush1.msra.mxu0 0.0
    %271 = vmatprep.subr.mxu0 0.0
    %272 = vmatpush1.msra.mxu0 0.0
    %273 = vmatprep.subr.mxu0 0.0
    %274 = vmatpush1.msra.mxu0 0.0
    %275 = vmatprep.subr.mxu0 0.0
    %276 = vmatpush1.msra.mxu0 0.0
    %277 = vmatprep.mubr.f32.mxu0 0.0
    %278 = vmatmul.mubr.f32.gmra.mrb[0].mxu0 %v208
    %v279 = vpop.f32.mrb[0].mxu0
    %v280 = vadd.f32 0.0, %v279
    %v281 = vpop.f32.mrb[0].mxu0
    %282 = vmatprep.mubr.f32.mxu0 0.0
    %283 = vmatmul.mubr.f32.gmra.mrb[0].mxu0 %v211
    %v284 = vpop.f32.mrb[0].mxu0
    %v285 = vadd.f32 0.0, %v284
    %v286 = vpop.f32.mrb[0].mxu0
    %287 = vdwg.mxu0
    %290 = vrot.lane.b32.xlu0 %v280, 120
    %v291 = vpop.permute.xlu0 %290
    %292 = vrot.lane.b32.xlu0 %v285, 120
    %v293 = vpop.permute.xlu0 %292
    %vm294 = vcmask 64512
    %v295 = vsel %vm294, %v280, 0
    %v297 = vsel %vm294, %v285, 0
    %v299 = vsel %vm294, %v291, 0
    %v301 = vsel %vm294, %v293, 0
    %303 = vmatprep.subr.mxu0 0.0
    %304 = vmatpush1.xpose.msra.mxu0 %v299
    %305 = vmatprep.subr.mxu0 0.0
    %306 = vmatpush1.xpose.msra.mxu0 %v301
    %307 = vmatprep.subr.mxu0 0.0
    %308 = vmatpush1.xpose.msra.mxu0 0.0
    %309 = vmatprep.subr.mxu0 0.0
    %310 = vmatpush1.xpose.msra.mxu0 0.0
    %311 = vmatprep.subr.mxu0 0.0
    %312 = vmatpush1.xpose.msra.mxu0 0.0
    %313 = vmatprep.subr.mxu0 0.0
    %314 = vmatpush1.xpose.msra.mxu0 0.0
    %315 = vmatprep.subr.mxu0 0.0
    %316 = vmatpush1.xpose.msra.mxu0 0.0
    %317 = vmatprep.subr.mxu0 0.0
    %318 = vmatpush1.xpose.msra.mxu0 0.0
    %319 = vmatprep.subr.mxu0 0.0
    %320 = vmatpush1.xpose.msra.mxu0 0.0
    %321 = vmatprep.subr.mxu0 0.0
    %322 = vmatpush1.xpose.msra.mxu0 0.0
    %323 = vmatprep.subr.mxu0 0.0
    %324 = vmatpush1.xpose.msra.mxu0 0.0
    %325 = vmatprep.subr.mxu0 0.0
    %326 = vmatpush1.xpose.msra.mxu0 0.0
    %327 = vmatprep.subr.mxu0 0.0
    %328 = vmatpush1.xpose.msra.mxu0 0.0
    %329 = vmatprep.subr.mxu0 0.0
    %330 = vmatpush1.xpose.msra.mxu0 0.0
    %331 = vmatprep.subr.mxu0 0.0
    %332 = vmatpush1.xpose.msra.mxu0 0.0
    %333 = vmatprep.subr.mxu0 0.0
    %334 = vmatpush1.xpose.msra.mxu0 0.0
    %335 = vmatprep.subr.mxu0 0.0
    %336 = vmatpush1.xpose.msra.mxu0 0.0
    %337 = vmatprep.subr.mxu0 0.0
    %338 = vmatpush1.xpose.msra.mxu0 0.0
    %339 = vmatprep.subr.mxu0 0.0
    %340 = vmatpush1.xpose.msra.mxu0 0.0
    %341 = vmatprep.subr.mxu0 0.0
    %342 = vmatpush1.xpose.msra.mxu0 0.0
    %343 = vmatprep.subr.mxu0 0.0
    %344 = vmatpush1.xpose.msra.mxu0 0.0
    %345 = vmatprep.subr.mxu0 0.0
    %346 = vmatpush1.xpose.msra.mxu0 0.0
    %347 = vmatprep.subr.mxu0 0.0
    %348 = vmatpush1.xpose.msra.mxu0 0.0
    %349 = vmatprep.subr.mxu0 0.0
    %350 = vmatpush1.xpose.msra.mxu0 0.0
    %351 = vmatprep.subr.mxu0 0.0
    %352 = vmatpush1.xpose.msra.mxu0 0.0
    %353 = vmatprep.subr.mxu0 0.0
    %354 = vmatpush1.xpose.msra.mxu0 0.0
    %355 = vmatprep.subr.mxu0 0.0
    %356 = vmatpush1.xpose.msra.mxu0 0.0
    %357 = vmatprep.subr.mxu0 0.0
    %358 = vmatpush1.xpose.msra.mxu0 0.0
    %359 = vmatprep.subr.mxu0 0.0
    %360 = vmatpush1.xpose.msra.mxu0 0.0
    %361 = vmatprep.subr.mxu0 0.0
    %362 = vmatpush1.xpose.msra.mxu0 0.0
    %363 = vmatprep.subr.mxu0 0.0
    %364 = vmatpush1.xpose.msra.mxu0 0.0
    %365 = vmatprep.subr.mxu0 0.0
    %366 = vmatpush1.xpose.msra.mxu0 0.0
    %367 = vmatprep.mubr.f32.mxu0 0.0
    %368 = vmatmul.mubr.f32.gmra.mrb[0].mxu0 %v295
    %v369 = vpop.f32.mrb[0].mxu0
    %v370 = vadd.f32 0.0, %v369
    %v371 = vpop.f32.mrb[0].mxu0
    %372 = vmatprep.mubr.f32.mxu0 0.0
    %373 = vmatmul.mubr.f32.gmra.mrb[0].mxu0 %v297
    %v374 = vpop.f32.mrb[0].mxu0
    %v375 = vadd.f32 0.0, %v374
    %v376 = vpop.f32.mrb[0].mxu0
    %377 = vdwg.mxu0
    %v378 = vmul.f32 %v370, 0.35355338
    %v379 = vmul.f32 %v375, 0.35355338
    %v380 = vadd.f32 %v378, %v133
    %v381 = vadd.f32 %v379, %v134
    %vm382 = vcmask 130048
    %v383 = vsel %vm382, %v380, -inf
    %384 = vmax.xlane.f32.xlu0 %v383
    %v385 = vpop.xlane.xlu0 %384
    %v386 = vsel %vm382, %v381, -inf
    %387 = vmax.xlane.f32.xlu0 %v386
    %v388 = vpop.xlane.xlu0 %387
    %v389 = vsub.f32 %v380, %v385
    %v390 = vsub.f32 %v381, %v388
    %v391 = vmul.f32 %v389, 1.442695
    %v392 = vpow.pop %v391
    %v393 = vmul.f32 %v390, 1.442695
    %v394 = vpow.pop %v393
    %v395 = vsel %vm382, %v392, 0.0
    %396 = vadd.xlane.f32.xlu0 %v395
    %v397 = vpop.xlane.xlu0 %396
    %v398 = vsel %vm382, %v394, 0.0
    %399 = vadd.xlane.f32.xlu0 %v398
    %v400 = vpop.xlane.xlu0 %399
    %v401 = vrcp.pop %v397
    %v402 = vrcp.pop %v400
    %v403 = vmul.f32 %v392, %v401
    %v404 = vmul.f32 %v394, %v402
    %405 = vrot.lane.b32.xlu0 %v280, 112
    %v406 = vpop.permute.xlu0 %405
    %407 = vrot.lane.b32.xlu0 %v285, 112
    %v408 = vpop.permute.xlu0 %407
    %v412 = vsel %vm382, %v403, 0
    %v415 = vsel %vm382, %v404, 0
    %417 = vmatprep.subr.mxu0 0.0
    %418 = vmatpush1.msra.mxu0 %v406
    %419 = vmatprep.subr.mxu0 0.0
    %420 = vmatpush1.msra.mxu0 %v408
    %421 = vmatprep.subr.mxu0 0.0
    %422 = vmatpush1.msra.mxu0 0.0
    %423 = vmatprep.subr.mxu0 0.0
    %424 = vmatpush1.msra.mxu0 0.0
    %425 = vmatprep.subr.mxu0 0.0
    %426 = vmatpush1.msra.mxu0 0.0
    %427 = vmatprep.subr.mxu0 0.0
    %428 = vmatpush1.msra.mxu0 0.0
    %429 = vmatprep.subr.mxu0 0.0
    %430 = vmatpush1.msra.mxu0 0.0
    %431 = vmatprep.subr.mxu0 0.0
    %432 = vmatpush1.msra.mxu0 0.0
    %433 = vmatprep.subr.mxu0 0.0
    %434 = vmatpush1.msra.mxu0 0.0
    %435 = vmatprep.subr.mxu0 0.0
    %436 = vmatpush1.msra.mxu0 0.0
    %437 = vmatprep.subr.mxu0 0.0
    %438 = vmatpush1.msra.mxu0 0.0
    %439 = vmatprep.subr.mxu0 0.0
    %440 = vmatpush1.msra.mxu0 0.0
    %441 = vmatprep.subr.mxu0 0.0
    %442 = vmatpush1.msra.mxu0 0.0
    %443 = vmatprep.subr.mxu0 0.0
    %444 = vmatpush1.msra.mxu0 0.0
    %445 = vmatprep.subr.mxu0 0.0
    %446 = vmatpush1.msra.mxu0 0.0
    %447 = vmatprep.subr.mxu0 0.0
    %448 = vmatpush1.msra.mxu0 0.0
    %449 = vmatprep.subr.mxu0 0.0
    %450 = vmatpush1.msra.mxu0 0.0
    %451 = vmatprep.subr.mxu0 0.0
    %452 = vmatpush1.msra.mxu0 0.0
    %453 = vmatprep.subr.mxu0 0.0
    %454 = vmatpush1.msra.mxu0 0.0
    %455 = vmatprep.subr.mxu0 0.0
    %456 = vmatpush1.msra.mxu0 0.0
    %457 = vmatprep.subr.mxu0 0.0
    %458 = vmatpush1.msra.mxu0 0.0
    %459 = vmatprep.subr.mxu0 0.0
    %460 = vmatpush1.msra.mxu0 0.0
    %461 = vmatprep.subr.mxu0 0.0
    %462 = vmatpush1.msra.mxu0 0.0
    %463 = vmatprep.subr.mxu0 0.0
    %464 = vmatpush1.msra.mxu0 0.0
    %465 = vmatprep.subr.mxu0 0.0
    %466 = vmatpush1.msra.mxu0 0.0
    %467 = vmatprep.subr.mxu0 0.0
    %468 = vmatpush1.msra.mxu0 0.0
    %469 = vmatprep.subr.mxu0 0.0
    %470 = vmatpush1.msra.mxu0 0.0
    %471 = vmatprep.subr.mxu0 0.0
    %472 = vmatpush1.msra.mxu0 0.0
    %473 = vmatprep.subr.mxu0 0.0
    %474 = vmatpush1.msra.mxu0 0.0
    %475 = vmatprep.subr.mxu0 0.0
    %476 = vmatpush1.msra.mxu0 0.0
    %477 = vmatprep.subr.mxu0 0.0
    %478 = vmatpush1.msra.mxu0 0.0
    %479 = vmatprep.subr.mxu0 0.0
    %480 = vmatpush1.msra.mxu0 0.0
    %481 = vmatprep.mubr.f32.mxu0 0.0
    %482 = vmatmul.mubr.f32.gmra.mrb[0].mxu0 %v412
    %v483 = vpop.f32.mrb[0].mxu0
    %v484 = vadd.f32 0.0, %v483
    %v485 = vpop.f32.mrb[0].mxu0
    %486 = vmatprep.mubr.f32.mxu0 0.0
    %487 = vmatmul.mubr.f32.gmra.mrb[0].mxu0 %v415
    %v488 = vpop.f32.mrb[0].mxu0
    %v489 = vadd.f32 0.0, %v488
    %v490 = vpop.f32.mrb[0].mxu0
    %491 = vdwg.mxu0
    %v493 = vsel %vm294, %v484, 0
    %v496 = vsel %vm294, %v489, 0
    %498 = vmatprep.subr.mxu0 0.0
    %499 = vmatpush1.msra.mxu0 %v146
    %500 = vmatprep.subr.mxu0 0.0
    %501 = vmatpush1.msra.mxu0 0.0
    %502 = vmatprep.subr.mxu0 0.0
    %503 = vmatpush1.msra.mxu0 0.0
    %504 = vmatprep.subr.mxu0 0.0
    %505 = vmatpush1.msra.mxu0 0.0
    %506 = vmatprep.subr.mxu0 0.0
    %507 = vmatpush1.msra.mxu0 0.0
    %508 = vmatprep.subr.mxu0 0.0
    %509 = vmatpush1.msra.mxu0 0.0
    %510 = vmatprep.subr.mxu0 0.0
    %511 = vmatpush1.msra.mxu0 0.0
    %512 = vmatprep.subr.mxu0 0.0
    %513 = vmatpush1.msra.mxu0 0.0
    %514 = vmatprep.subr.mxu0 0.0
    %515 = vmatpush1.msra.mxu0 0.0
    %516 = vmatprep.subr.mxu0 0.0
    %517 = vmatpush1.msra.mxu0 0.0
    %518 = vmatprep.subr.mxu0 0.0
    %519 = vmatpush1.msra.mxu0 0.0
    %520 = vmatprep.subr.mxu0 0.0
    %521 = vmatpush1.msra.mxu0 0.0
    %522 = vmatprep.subr.mxu0 0.0
    %523 = vmatpush1.msra.mxu0 0.0
    %524 = vmatprep.subr.mxu0 0.0
    %525 = vmatpush1.msra.mxu0 0.0
    %526 = vmatprep.subr.mxu0 0.0
    %527 = vmatpush1.msra.mxu0 0.0
    %528 = vmatprep.subr.mxu0 0.0
    %529 = vmatpush1.msra.mxu0 0.0
    %530 = vmatprep.subr.mxu0 0.0
    %531 = vmatpush1.msra.mxu0 0.0
    %532 = vmatprep.subr.mxu0 0.0
    %533 = vmatpush1.msra.mxu0 0.0
    %534 = vmatprep.subr.mxu0 0.0
    %535 = vmatpush1.msra.mxu0 0.0
    %536 = vmatprep.subr.mxu0 0.0
    %537 = vmatpush1.msra.mxu0 0.0
    %538 = vmatprep.subr.mxu0 0.0
    %539 = vmatpush1.msra.mxu0 0.0
    %540 = vmatprep.subr.mxu0 0.0
    %541 = vmatpush1.msra.mxu0 0.0
    %542 = vmatprep.subr.mxu0 0.0
    %543 = vmatpush1.msra.mxu0 0.0
    %544 = vmatprep.subr.mxu0 0.0
    %545 = vmatpush1.msra.mxu0 0.0
    %546 = vmatprep.subr.mxu0 0.0
    %547 = vmatpush1.msra.mxu0 0.0
    %548 = vmatprep.subr.mxu0 0.0
    %549 = vmatpush1.msra.mxu0 0.0
    %550 = vmatprep.subr.mxu0 0.0
    %551 = vmatpush1.msra.mxu0 0.0
    %552 = vmatprep.subr.mxu0 0.0
    %553 = vmatpush1.msra.mxu0 0.0
    %554 = vmatprep.subr.mxu0 0.0
    %555 = vmatpush1.msra.mxu0 0.0
    %556 = vmatprep.subr.mxu0 0.0
    %557 = vmatpush1.msra.mxu0 0.0
    %558 = vmatprep.subr.mxu0 0.0
    %559 = vmatpush1.msra.mxu0 0.0
    %560 = vmatprep.subr.mxu0 0.0
    %561 = vmatpush1.msra.mxu0 0.0
    %562 = vmatprep.mubr.f32.mxu0 0.0
    %563 = vmatmul.mubr.f32.gmra.mrb[0].mxu0 %v493
    %v564 = vpop.f32.mrb[0].mxu0
    %v565 = vadd.f32 0.0, %v564
    %v566 = vpop.f32.mrb[0].mxu0
    %567 = vmatprep.mubr.f32.mxu0 0.0
    %568 = vmatmul.mubr.f32.gmra.mrb[0].mxu0 %v496
    %v569 = vpop.f32.mrb[0].mxu0
    %v570 = vadd.f32 0.0, %v569
    %v571 = vpop.f32.mrb[0].mxu0
    %572 = vdwg.mxu0
    %v573 = vadd.f32 %v125, %v565
    %v574 = vadd.f32 %v130, %v570
    %v575 = vlaneseq
    %v576 = vshrl.u32 %v575, 7
    %v577 = vsub.s32 0, %v576
    %v578 = vrot.slane %v139, %v577
    %v579 = vadd.f32 %v573, %v578
    %v580 = vadd.f32 %v574, %v578
    %v581 = vsel %vm167, %v579, 0.0
    %582 = vadd.xlane.f32.xlu0 %v581
    %v583 = vpop.xlane.xlu0 %582
    %v584 = vsel %vm167, %v580, 0.0
    %585 = vadd.xlane.f32.xlu0 %v584
    %v586 = vpop.xlane.xlu0 %585
    %v587 = vmul.f32 %v583, %v174
    %v588 = vmul.f32 %v586, %v174
    %v589 = vsub.f32 %v579, %v587
    %v590 = vsub.f32 %v580, %v588
    %v591 = vmul.f32 %v589, %v589
    %v592 = vmul.f32 %v590, %v590
    %v593 = vsel %vm167, %v591, 0.0
    %594 = vadd.xlane.f32.xlu0 %v593
    %v595 = vpop.xlane.xlu0 %594
    %v596 = vsel %vm167, %v592, 0.0
    %597 = vadd.xlane.f32.xlu0 %v596
    %v598 = vpop.xlane.xlu0 %597
    %v599 = vmul.f32 %v595, %v174
    %v600 = vmul.f32 %v598, %v174
    %v601 = vadd.f32 %v599, 1e-05
    %v602 = vadd.f32 %v600, 1e-05
    %v603 = vrsqrt.pop %v601
    %v604 = vrsqrt.pop %v602
    %v605 = vmul.f32 %v589, %v603
    %v606 = vmul.f32 %v590, %v604
    %v607 = vlaneseq
    %v608 = vshrl.u32 %v607, 7
    %v609 = vsub.s32 0, %v608
    %v610 = vrot.slane %v137, %v609
    %v611 = vmul.f32 %v605, %v610
    %v612 = vmul.f32 %v606, %v610
    %v613 = vlaneseq
    %v614 = vshrl.u32 %v613, 7
    %v615 = vsub.s32 0, %v614
    %v616 = vrot.slane %v138, %v615
    %v617 = vadd.f32 %v611, %v616
    %v618 = vadd.f32 %v612, %v616
    %v619 = vlaneseq
    %v620 = vshrl.u32 %v619, 7
    %v621 = vsub.s32 0, %v620
    %v622 = vrot.slane %v141, %v621
    %v624 = vsel %vm167, %v617, 0
    %v627 = vsel %vm167, %v618, 0
    %629 = vmatprep.subr.mxu0 0.0
    %630 = vmatpush1.msra.mxu0 %v147
    %631 = vmatprep.subr.mxu0 0.0
    %632 = vmatpush1.msra.mxu0 %v148
    %633 = vmatprep.subr.mxu0 0.0
    %634 = vmatpush1.msra.mxu0 %v149
    %635 = vmatprep.subr.mxu0 0.0
    %636 = vmatpush1.msra.mxu0 %v150
    %637 = vmatprep.subr.mxu0 0.0
    %638 = vmatpush1.msra.mxu0 0.0
    %639 = vmatprep.subr.mxu0 0.0
    %640 = vmatpush1.msra.mxu0 0.0
    %641 = vmatprep.subr.mxu0 0.0
    %642 = vmatpush1.msra.mxu0 0.0
    %643 = vmatprep.subr.mxu0 0.0
    %644 = vmatpush1.msra.mxu0 0.0
    %645 = vmatprep.subr.mxu0 0.0
    %646 = vmatpush1.msra.mxu0 0.0
    %647 = vmatprep.subr.mxu0 0.0
    %648 = vmatpush1.msra.mxu0 0.0
    %649 = vmatprep.subr.mxu0 0.0
    %650 = vmatpush1.msra.mxu0 0.0
    %651 = vmatprep.subr.mxu0 0.0
    %652 = vmatpush1.msra.mxu0 0.0
    %653 = vmatprep.subr.mxu0 0.0
    %654 = vmatpush1.msra.mxu0 0.0
    %655 = vmatprep.subr.mxu0 0.0
    %656 = vmatpush1.msra.mxu0 0.0
    %657 = vmatprep.subr.mxu0 0.0
    %658 = vmatpush1.msra.mxu0 0.0
    %659 = vmatprep.subr.mxu0 0.0
    %660 = vmatpush1.msra.mxu0 0.0
    %661 = vmatprep.subr.mxu0 0.0
    %662 = vmatpush1.msra.mxu0 0.0
    %663 = vmatprep.subr.mxu0 0.0
    %664 = vmatpush1.msra.mxu0 0.0
    %665 = vmatprep.subr.mxu0 0.0
    %666 = vmatpush1.msra.mxu0 0.0
    %667 = vmatprep.subr.mxu0 0.0
    %668 = vmatpush1.msra.mxu0 0.0
    %669 = vmatprep.subr.mxu0 0.0
    %670 = vmatpush1.msra.mxu0 0.0
    %671 = vmatprep.subr.mxu0 0.0
    %672 = vmatpush1.msra.mxu0 0.0
    %673 = vmatprep.subr.mxu0 0.0
    %674 = vmatpush1.msra.mxu0 0.0
    %675 = vmatprep.subr.mxu0 0.0
    %676 = vmatpush1.msra.mxu0 0.0
    %677 = vmatprep.subr.mxu0 0.0
    %678 = vmatpush1.msra.mxu0 0.0
    %679 = vmatprep.subr.mxu0 0.0
    %680 = vmatpush1.msra.mxu0 0.0
    %681 = vmatprep.subr.mxu0 0.0
    %682 = vmatpush1.msra.mxu0 0.0
    %683 = vmatprep.subr.mxu0 0.0
    %684 = vmatpush1.msra.mxu0 0.0
    %685 = vmatprep.subr.mxu0 0.0
    %686 = vmatpush1.msra.mxu0 0.0
    %687 = vmatprep.subr.mxu0 0.0
    %688 = vmatpush1.msra.mxu0 0.0
    %689 = vmatprep.subr.mxu0 0.0
    %690 = vmatpush1.msra.mxu0 0.0
    %691 = vmatprep.subr.mxu0 0.0
    %692 = vmatpush1.msra.mxu0 0.0
    %693 = vmatprep.mubr.f32.mxu0 0.0
    %694 = vmatmul.mubr.f32.gmra.mrb[0].mxu0 %v624
    %v695 = vpop.f32.mrb[0].mxu0
    %v696 = vadd.f32 %v622, %v695
    %v697 = vpop.f32.mrb[0].mxu0
    %698 = vmatprep.mubr.f32.mxu0 0.0
    %699 = vmatmul.mubr.f32.gmra.mrb[0].mxu0 %v627
    %v700 = vpop.f32.mrb[0].mxu0
    %v701 = vadd.f32 %v622, %v700
    %v702 = vpop.f32.mrb[0].mxu0
    %703 = vdwg.mxu0
    %v704 = vmul.f32 %v696, 0.5
    %v705 = vmul.f32 %v701, 0.5
    %v706 = vmul.f32 %v696, 0.70710677
    %v707 = vmul.f32 %v701, 0.70710677
    %vm708 = vcmp.ge.f32.partialorder %v706, 0.0
    %vm709 = vcmp.ge.f32.partialorder %v707, 0.0
    %v710 = vsel %vm708, 1.0, -1.0
    %v711 = vsel %vm709, 1.0, -1.0
    %v712 = vand.u32 2147483647, %v706
    %v713 = vand.u32 2147483647, %v707
    %v714 = vmul.f32 %v712, 0.3275911
    %v715 = vmul.f32 %v713, 0.3275911
    %v716 = vadd.f32 %v714, 1.0
    %v717 = vadd.f32 %v715, 1.0
    %v718 = vrcp.pop %v716
    %v719 = vmul.f32 1.0, %v718
    %v720 = vrcp.pop %v717
    %v721 = vmul.f32 1.0, %v720
    %v722 = vmul.f32 %v719, 1.0614054
    %v723 = vmul.f32 %v721, 1.0614054
    %v724 = vadd.f32 %v722, -1.4531521
    %v725 = vadd.f32 %v723, -1.4531521
    %v726 = vmul.f32 %v724, %v719
    %v727 = vmul.f32 %v725, %v721
    %v728 = vadd.f32 %v726, 1.4214138
    %v729 = vadd.f32 %v727, 1.4214138
    %v730 = vmul.f32 %v728, %v719
    %v731 = vmul.f32 %v729, %v721
    %v732 = vadd.f32 %v730, -0.28449672
    %v733 = vadd.f32 %v731, -0.28449672
    %v734 = vmul.f32 %v732, %v719
    %v735 = vmul.f32 %v733, %v721
    %v736 = vadd.f32 %v734, 0.2548296
    %v737 = vadd.f32 %v735, 0.2548296
    %v738 = vmul.f32 %v736, %v719
    %v739 = vmul.f32 %v737, %v721
    %v740 = vsub.f32 0.0, %v712
    %v741 = vsub.f32 0.0, %v713
    %v742 = vmul.f32 %v740, %v712
    %v743 = vmul.f32 %v741, %v713
    %v744 = vmul.f32 %v742, 1.442695
    %v745 = vpow.pop %v744
    %v746 = vmul.f32 %v743, 1.442695
    %v747 = vpow.pop %v746
    %v748 = vmul.f32 %v738, %v745
    %v749 = vmul.f32 %v739, %v747
    %v750 = vsub.f32 1.0, %v748
    %v751 = vsub.f32 1.0, %v749
    %v752 = vmul.f32 %v710, %v750
    %v753 = vmul.f32 %v711, %v751
    %v754 = vadd.f32 %v752, 1.0
    %v755 = vadd.f32 %v753, 1.0
    %v756 = vmul.f32 %v704, %v754
    %v757 = vmul.f32 %v705, %v755
    %758 = vmatprep.subr.mxu0 0.0
    %759 = vmatpush1.msra.mxu0 %v151
    %760 = vmatprep.subr.mxu0 0.0
    %761 = vmatpush1.msra.mxu0 %v152
    %762 = vmatprep.subr.mxu0 0.0
    %763 = vmatpush1.msra.mxu0 %v153
    %764 = vmatprep.subr.mxu0 0.0
    %765 = vmatpush1.msra.mxu0 %v154
    %766 = vmatprep.subr.mxu0 0.0
    %767 = vmatpush1.msra.mxu0 %v155
    %768 = vmatprep.subr.mxu0 0.0
    %769 = vmatpush1.msra.mxu0 %v156
    %770 = vmatprep.subr.mxu0 0.0
    %771 = vmatpush1.msra.mxu0 %v157
    %772 = vmatprep.subr.mxu0 0.0
    %773 = vmatpush1.msra.mxu0 %v158
    %774 = vmatprep.subr.mxu0 0.0
    %775 = vmatpush1.msra.mxu0 %v159
    %776 = vmatprep.subr.mxu0 0.0
    %777 = vmatpush1.msra.mxu0 %v160
    %778 = vmatprep.subr.mxu0 0.0
    %779 = vmatpush1.msra.mxu0 %v161
    %780 = vmatprep.subr.mxu0 0.0
    %781 = vmatpush1.msra.mxu0 %v162
    %782 = vmatprep.subr.mxu0 0.0
    %783 = vmatpush1.msra.mxu0 %v163
    %784 = vmatprep.subr.mxu0 0.0
    %785 = vmatpush1.msra.mxu0 %v164
    %786 = vmatprep.subr.mxu0 0.0
    %787 = vmatpush1.msra.mxu0 %v165
    %788 = vmatprep.subr.mxu0 0.0
    %789 = vmatpush1.msra.mxu0 %v166
    %790 = vmatprep.subr.mxu0 0.0
    %791 = vmatpush1.msra.mxu0 0.0
    %792 = vmatprep.subr.mxu0 0.0
    %793 = vmatpush1.msra.mxu0 0.0
    %794 = vmatprep.subr.mxu0 0.0
    %795 = vmatpush1.msra.mxu0 0.0
    %796 = vmatprep.subr.mxu0 0.0
    %797 = vmatpush1.msra.mxu0 0.0
    %798 = vmatprep.subr.mxu0 0.0
    %799 = vmatpush1.msra.mxu0 0.0
    %800 = vmatprep.subr.mxu0 0.0
    %801 = vmatpush1.msra.mxu0 0.0
    %802 = vmatprep.subr.mxu0 0.0
    %803 = vmatpush1.msra.mxu0 0.0
    %804 = vmatprep.subr.mxu0 0.0
    %805 = vmatpush1.msra.mxu0 0.0
    %806 = vmatprep.subr.mxu0 0.0
    %807 = vmatpush1.msra.mxu0 0.0
    %808 = vmatprep.subr.mxu0 0.0
    %809 = vmatpush1.msra.mxu0 0.0
    %810 = vmatprep.subr.mxu0 0.0
    %811 = vmatpush1.msra.mxu0 0.0
    %812 = vmatprep.subr.mxu0 0.0
    %813 = vmatpush1.msra.mxu0 0.0
    %814 = vmatprep.subr.mxu0 0.0
    %815 = vmatpush1.msra.mxu0 0.0
    %816 = vmatprep.subr.mxu0 0.0
    %817 = vmatpush1.msra.mxu0 0.0
    %818 = vmatprep.subr.mxu0 0.0
    %819 = vmatpush1.msra.mxu0 0.0
    %820 = vmatprep.subr.mxu0 0.0
    %821 = vmatpush1.msra.mxu0 0.0
    %822 = vmatprep.mubr.f32.mxu0 0.0
    %823 = vmatmul.mubr.f32.gmra.mrb[0].mxu0 %v756
    %v824 = vpop.f32.mrb[0].mxu0
    %v825 = vadd.f32 0.0, %v824
    %v826 = vpop.f32.mrb[0].mxu0
    %827 = vmatprep.mubr.f32.mxu0 0.0
    %828 = vmatmul.mubr.f32.gmra.mrb[0].mxu0 %v757
    %v829 = vpop.f32.mrb[0].mxu0
    %v830 = vadd.f32 0.0, %v829
    %v831 = vpop.f32.mrb[0].mxu0
    %832 = vdwg.mxu0
    %v833 = vadd.f32 %v579, %v825
    %v834 = vadd.f32 %v580, %v830
    %v835 = vlaneseq
    %v836 = vshrl.u32 %v835, 7
    %v837 = vsub.s32 0, %v836
    %v838 = vrot.slane %v140, %v837
    %v839 = vadd.f32 %v833, %v838
    %v840 = vadd.f32 %v834, %v838
    %v841 = vld [vmem:[#allocation2 + $0x138] sm:$0x1]
    %v842 = vld [vmem:[#allocation2 + $0x139] sm:$0x1]
    %v843 = vld [vmem:[#allocation2 + $0x13a] sm:$0x1]
    %v844 = vld [vmem:[#allocation2 + $0x13b] sm:$0x1]
    %v845 = vld [vmem:[#allocation2 + $0x13c] sm:$0x1]
    %v846 = vld [vmem:[#allocation2 + $0x13d] sm:$0x1]
    %v847 = vld [vmem:[#allocation2 + $0x13e] sm:$0x1]
    %v848 = vld [vmem:[#allocation2 + $0x140] sm:$0xff]
    %v849 = vld [vmem:[#allocation2 + $0x148] sm:$0xff]
    %v850 = vld [vmem:[#allocation2 + $0x150] sm:$0xff]
    %v851 = vld [vmem:[#allocation2 + $0x158] sm:$0xff]
    %v852 = vld [vmem:[#allocation2 + $0x160] sm:$0xff]
    %v853 = vld [vmem:[#allocation2 + $0x168] sm:$0xff]
    %v854 = vld [vmem:[#allocation2 + $0x170] sm:$0xff]
    %v855 = vld [vmem:[#allocation2 + $0x178] sm:$0xff]
    %v856 = vld [vmem:[#allocation2 + $0x180] sm:$0xff]
    %v857 = vld [vmem:[#allocation2 + $0x188] sm:$0xff]
    %v858 = vld [vmem:[#allocation2 + $0x190] sm:$0xff]
    %v859 = vld [vmem:[#allocation2 + $0x198] sm:$0xff]
    %v860 = vld [vmem:[#allocation2 + $0x1a0] sm:$0xff]
    %v861 = vld [vmem:[#allocation2 + $0x1a8] sm:$0xff]
    %v862 = vld [vmem:[#allocation2 + $0x1b0] sm:$0xff]
    %v863 = vld [vmem:[#allocation2 + $0x1b8] sm:$0xff]
    %v864 = vld [vmem:[#allocation2 + $0x1c0] sm:$0xff]
    %v865 = vld [vmem:[#allocation2 + $0x1c8] sm:$0xff]
    %v866 = vld [vmem:[#allocation2 + $0x1d0] sm:$0xff]
    %v867 = vld [vmem:[#allocation2 + $0x1d8] sm:$0xff]
    %v868 = vld [vmem:[#allocation2 + $0x1e0] sm:$0xff]
    %v869 = vld [vmem:[#allocation2 + $0x1e8] sm:$0xff]
    %v870 = vld [vmem:[#allocation2 + $0x1f0] sm:$0xff]
    %v871 = vld [vmem:[#allocation2 + $0x1f8] sm:$0xff]
    %v872 = vld [vmem:[#allocation2 + $0x200] sm:$0xff]
    %v873 = vsel %vm167, %v839, 0.0
    %874 = vadd.xlane.f32.xlu0 %v873
    %v875 = vpop.xlane.xlu0 %874
    %v876 = vsel %vm167, %v840, 0.0
    %877 = vadd.xlane.f32.xlu0 %v876
    %v878 = vpop.xlane.xlu0 %877
    %v879 = vmul.f32 %v875, %v174
    %v880 = vmul.f32 %v878, %v174
    %v881 = vsub.f32 %v839, %v879
    %v882 = vsub.f32 %v840, %v880
    %v883 = vmul.f32 %v881, %v881
    %v884 = vmul.f32 %v882, %v882
    %v885 = vsel %vm167, %v883, 0.0
    %886 = vadd.xlane.f32.xlu0 %v885
    %v887 = vpop.xlane.xlu0 %886
    %v888 = vsel %vm167, %v884, 0.0
    %889 = vadd.xlane.f32.xlu0 %v888
    %v890 = vpop.xlane.xlu0 %889
    %v891 = vmul.f32 %v887, %v174
    %v892 = vmul.f32 %v890, %v174
    %v893 = vadd.f32 %v891, 1e-05
    %v894 = vadd.f32 %v892, 1e-05
    %v895 = vrsqrt.pop %v893
    %v896 = vrsqrt.pop %v894
    %v897 = vmul.f32 %v881, %v895
    %v898 = vmul.f32 %v882, %v896
    %v899 = vlaneseq
    %v900 = vshrl.u32 %v899, 7
    %v901 = vsub.s32 0, %v900
    %v902 = vrot.slane %v841, %v901
    %v903 = vmul.f32 %v897, %v902
    %v904 = vmul.f32 %v898, %v902
    %v905 = vlaneseq
    %v906 = vshrl.u32 %v905, 7
    %v907 = vsub.s32 0, %v906
    %v908 = vrot.slane %v842, %v907
    %v909 = vadd.f32 %v903, %v908
    %v910 = vadd.f32 %v904, %v908
    %v912 = vsel %vm167, %v909, 0
    %v915 = vsel %vm167, %v910, 0
    %917 = vmatprep.subr.mxu0 0.0
    %918 = vmatpush1.msra.mxu0 %v848
    %919 = vmatprep.subr.mxu0 0.0
    %920 = vmatpush1.msra.mxu0 %v849
    %921 = vmatprep.subr.mxu0 0.0
    %922 = vmatpush1.msra.mxu0 %v850
    %923 = vmatprep.subr.mxu0 0.0
    %924 = vmatpush1.msra.mxu0 %v851
    %925 = vmatprep.subr.mxu0 0.0
    %926 = vmatpush1.msra.mxu0 0.0
    %927 = vmatprep.subr.mxu0 0.0
    %928 = vmatpush1.msra.mxu0 0.0
    %929 = vmatprep.subr.mxu0 0.0
    %930 = vmatpush1.msra.mxu0 0.0
    %931 = vmatprep.subr.mxu0 0.0
    %932 = vmatpush1.msra.mxu0 0.0
    %933 = vmatprep.subr.mxu0 0.0
    %934 = vmatpush1.msra.mxu0 0.0
    %935 = vmatprep.subr.mxu0 0.0
    %936 = vmatpush1.msra.mxu0 0.0
    %937 = vmatprep.subr.mxu0 0.0
    %938 = vmatpush1.msra.mxu0 0.0
    %939 = vmatprep.subr.mxu0 0.0
    %940 = vmatpush1.msra.mxu0 0.0
    %941 = vmatprep.subr.mxu0 0.0
    %942 = vmatpush1.msra.mxu0 0.0
    %943 = vmatprep.subr.mxu0 0.0
    %944 = vmatpush1.msra.mxu0 0.0
    %945 = vmatprep.subr.mxu0 0.0
    %946 = vmatpush1.msra.mxu0 0.0
    %947 = vmatprep.subr.mxu0 0.0
    %948 = vmatpush1.msra.mxu0 0.0
    %949 = vmatprep.subr.mxu0 0.0
    %950 = vmatpush1.msra.mxu0 0.0
    %951 = vmatprep.subr.mxu0 0.0
    %952 = vmatpush1.msra.mxu0 0.0
    %953 = vmatprep.subr.mxu0 0.0
    %954 = vmatpush1.msra.mxu0 0.0
    %955 = vmatprep.subr.mxu0 0.0
    %956 = vmatpush1.msra.mxu0 0.0
    %957 = vmatprep.subr.mxu0 0.0
    %958 = vmatpush1.msra.mxu0 0.0
    %959 = vmatprep.subr.mxu0 0.0
    %960 = vmatpush1.msra.mxu0 0.0
    %961 = vmatprep.subr.mxu0 0.0
    %962 = vmatpush1.msra.mxu0 0.0
    %963 = vmatprep.subr.mxu0 0.0
    %964 = vmatpush1.msra.mxu0 0.0
    %965 = vmatprep.subr.mxu0 0.0
    %966 = vmatpush1.msra.mxu0 0.0
    %967 = vmatprep.subr.mxu0 0.0
    %968 = vmatpush1.msra.mxu0 0.0
    %969 = vmatprep.subr.mxu0 0.0
    %970 = vmatpush1.msra.mxu0 0.0
    %971 = vmatprep.subr.mxu0 0.0
    %972 = vmatpush1.msra.mxu0 0.0
    %973 = vmatprep.subr.mxu0 0.0
    %974 = vmatpush1.msra.mxu0 0.0
    %975 = vmatprep.subr.mxu0 0.0
    %976 = vmatpush1.msra.mxu0 0.0
    %977 = vmatprep.subr.mxu0 0.0
    %978 = vmatpush1.msra.mxu0 0.0
    %979 = vmatprep.subr.mxu0 0.0
    %980 = vmatpush1.msra.mxu0 0.0
    %981 = vmatprep.mubr.f32.mxu0 0.0
    %982 = vmatmul.mubr.f32.gmra.mrb[0].mxu0 %v912
    %v983 = vpop.f32.mrb[0].mxu0
    %v984 = vadd.f32 0.0, %v983
    %v985 = vpop.f32.mrb[0].mxu0
    %986 = vmatprep.mubr.f32.mxu0 0.0
    %987 = vmatmul.mubr.f32.gmra.mrb[0].mxu0 %v915
    %v988 = vpop.f32.mrb[0].mxu0
    %v989 = vadd.f32 0.0, %v988
    %v990 = vpop.f32.mrb[0].mxu0
    %991 = vdwg.mxu0
    %994 = vrot.lane.b32.xlu0 %v984, 120
    %v995 = vpop.permute.xlu0 %994
    %996 = vrot.lane.b32.xlu0 %v989, 120
    %v997 = vpop.permute.xlu0 %996
    %v998 = vsel %vm294, %v984, 0
    %v1000 = vsel %vm294, %v989, 0
    %v1002 = vsel %vm294, %v995, 0
    %v1004 = vsel %vm294, %v997, 0
    %1006 = vmatprep.subr.mxu0 0.0
    %1007 = vmatpush1.xpose.msra.mxu0 %v1002
    %1008 = vmatprep.subr.mxu0 0.0
    %1009 = vmatpush1.xpose.msra.mxu0 %v1004
    %1010 = vmatprep.subr.mxu0 0.0
    %1011 = vmatpush1.xpose.msra.mxu0 0.0
    %1012 = vmatprep.subr.mxu0 0.0
    %1013 = vmatpush1.xpose.msra.mxu0 0.0
    %1014 = vmatprep.subr.mxu0 0.0
    %1015 = vmatpush1.xpose.msra.mxu0 0.0
    %1016 = vmatprep.subr.mxu0 0.0
    %1017 = vmatpush1.xpose.msra.mxu0 0.0
    %1018 = vmatprep.subr.mxu0 0.0
    %1019 = vmatpush1.xpose.msra.mxu0 0.0
    %1020 = vmatprep.subr.mxu0 0.0
    %1021 = vmatpush1.xpose.msra.mxu0 0.0
    %1022 = vmatprep.subr.mxu0 0.0
    %1023 = vmatpush1.xpose.msra.mxu0 0.0
    %1024 = vmatprep.subr.mxu0 0.0
    %1025 = vmatpush1.xpose.msra.mxu0 0.0
    %1026 = vmatprep.subr.mxu0 0.0
    %1027 = vmatpush1.xpose.msra.mxu0 0.0
    %1028 = vmatprep.subr.mxu0 0.0
    %1029 = vmatpush1.xpose.msra.mxu0 0.0
    %1030 = vmatprep.subr.mxu0 0.0
    %1031 = vmatpush1.xpose.msra.mxu0 0.0
    %1032 = vmatprep.subr.mxu0 0.0
    %1033 = vmatpush1.xpose.msra.mxu0 0.0
    %1034 = vmatprep.subr.mxu0 0.0
    %1035 = vmatpush1.xpose.msra.mxu0 0.0
    %1036 = vmatprep.subr.mxu0 0.0
    %1037 = vmatpush1.xpose.msra.mxu0 0.0
    %1038 = vmatprep.subr.mxu0 0.0
    %1039 = vmatpush1.xpose.msra.mxu0 0.0
    %1040 = vmatprep.subr.mxu0 0.0
    %1041 = vmatpush1.xpose.msra.mxu0 0.0
    %1042 = vmatprep.subr.mxu0 0.0
    %1043 = vmatpush1.xpose.msra.mxu0 0.0
    %1044 = vmatprep.subr.mxu0 0.0
    %1045 = vmatpush1.xpose.msra.mxu0 0.0
    %1046 = vmatprep.subr.mxu0 0.0
    %1047 = vmatpush1.xpose.msra.mxu0 0.0
    %1048 = vmatprep.subr.mxu0 0.0
    %1049 = vmatpush1.xpose.msra.mxu0 0.0
    %1050 = vmatprep.subr.mxu0 0.0
    %1051 = vmatpush1.xpose.msra.mxu0 0.0
    %1052 = vmatprep.subr.mxu0 0.0
    %1053 = vmatpush1.xpose.msra.mxu0 0.0
    %1054 = vmatprep.subr.mxu0 0.0
    %1055 = vmatpush1.xpose.msra.mxu0 0.0
    %1056 = vmatprep.subr.mxu0 0.0
    %1057 = vmatpush1.xpose.msra.mxu0 0.0
    %1058 = vmatprep.subr.mxu0 0.0
    %1059 = vmatpush1.xpose.msra.mxu0 0.0
    %1060 = vmatprep.subr.mxu0 0.0
    %1061 = vmatpush1.xpose.msra.mxu0 0.0
    %1062 = vmatprep.subr.mxu0 0.0
    %1063 = vmatpush1.xpose.msra.mxu0 0.0
    %1064 = vmatprep.subr.mxu0 0.0
    %1065 = vmatpush1.xpose.msra.mxu0 0.0
    %1066 = vmatprep.subr.mxu0 0.0
    %1067 = vmatpush1.xpose.msra.mxu0 0.0
    %1068 = vmatprep.subr.mxu0 0.0
    %1069 = vmatpush1.xpose.msra.mxu0 0.0
    %1070 = vmatprep.mubr.f32.mxu0 0.0
    %1071 = vmatmul.mubr.f32.gmra.mrb[0].mxu0 %v998
    %v1072 = vpop.f32.mrb[0].mxu0
    %v1073 = vadd.f32 0.0, %v1072
    %v1074 = vpop.f32.mrb[0].mxu0
    %1075 = vmatprep.mubr.f32.mxu0 0.0
    %1076 = vmatmul.mubr.f32.gmra.mrb[0].mxu0 %v1000
    %v1077 = vpop.f32.mrb[0].mxu0
    %v1078 = vadd.f32 0.0, %v1077
    %v1079 = vpop.f32.mrb[0].mxu0
    %1080 = vdwg.mxu0
    %v1081 = vmul.f32 %v1073, 0.35355338
    %v1082 = vmul.f32 %v1078, 0.35355338
    %v1083 = vadd.f32 %v1081, %v133
    %v1084 = vadd.f32 %v1082, %v134
    %v1085 = vsel %vm382, %v1083, -inf
    %1086 = vmax.xlane.f32.xlu0 %v1085
    %v1087 = vpop.xlane.xlu0 %1086
    %v1088 = vsel %vm382, %v1084, -inf
    %1089 = vmax.xlane.f32.xlu0 %v1088
    %v1090 = vpop.xlane.xlu0 %1089
    %v1091 = vsub.f32 %v1083, %v1087
    %v1092 = vsub.f32 %v1084, %v1090
    %v1093 = vmul.f32 %v1091, 1.442695
    %v1094 = vpow.pop %v1093
    %v1095 = vmul.f32 %v1092, 1.442695
    %v1096 = vpow.pop %v1095
    %v1097 = vsel %vm382, %v1094, 0.0
    %1098 = vadd.xlane.f32.xlu0 %v1097
    %v1099 = vpop.xlane.xlu0 %1098
    %v1100 = vsel %vm382, %v1096, 0.0
    %1101 = vadd.xlane.f32.xlu0 %v1100
    %v1102 = vpop.xlane.xlu0 %1101
    %v1103 = vrcp.pop %v1099
    %v1104 = vrcp.pop %v1102
    %v1105 = vmul.f32 %v1094, %v1103
    %v1106 = vmul.f32 %v1096, %v1104
    %1107 = vrot.lane.b32.xlu0 %v984, 112
    %v1108 = vpop.permute.xlu0 %1107
    %1109 = vrot.lane.b32.xlu0 %v989, 112
    %v1110 = vpop.permute.xlu0 %1109
    %v1114 = vsel %vm382, %v1105, 0
    %v1117 = vsel %vm382, %v1106, 0
    %1119 = vmatprep.subr.mxu0 0.0
    %1120 = vmatpush1.msra.mxu0 %v1108
    %1121 = vmatprep.subr.mxu0 0.0
    %1122 = vmatpush1.msra.mxu0 %v1110
    %1123 = vmatprep.subr.mxu0 0.0
    %1124 = vmatpush1.msra.mxu0 0.0
    %1125 = vmatprep.subr.mxu0 0.0
    %1126 = vmatpush1.msra.mxu0 0.0
    %1127 = vmatprep.subr.mxu0 0.0
    %1128 = vmatpush1.msra.mxu0 0.0
    %1129 = vmatprep.subr.mxu0 0.0
    %1130 = vmatpush1.msra.mxu0 0.0
    %1131 = vmatprep.subr.mxu0 0.0
    %1132 = vmatpush1.msra.mxu0 0.0
    %1133 = vmatprep.subr.mxu0 0.0
    %1134 = vmatpush1.msra.mxu0 0.0
    %1135 = vmatprep.subr.mxu0 0.0
    %1136 = vmatpush1.msra.mxu0 0.0
    %1137 = vmatprep.subr.mxu0 0.0
    %1138 = vmatpush1.msra.mxu0 0.0
    %1139 = vmatprep.subr.mxu0 0.0
    %1140 = vmatpush1.msra.mxu0 0.0
    %1141 = vmatprep.subr.mxu0 0.0
    %1142 = vmatpush1.msra.mxu0 0.0
    %1143 = vmatprep.subr.mxu0 0.0
    %1144 = vmatpush1.msra.mxu0 0.0
    %1145 = vmatprep.subr.mxu0 0.0
    %1146 = vmatpush1.msra.mxu0 0.0
    %1147 = vmatprep.subr.mxu0 0.0
    %1148 = vmatpush1.msra.mxu0 0.0
    %1149 = vmatprep.subr.mxu0 0.0
    %1150 = vmatpush1.msra.mxu0 0.0
    %1151 = vmatprep.subr.mxu0 0.0
    %1152 = vmatpush1.msra.mxu0 0.0
    %1153 = vmatprep.subr.mxu0 0.0
    %1154 = vmatpush1.msra.mxu0 0.0
    %1155 = vmatprep.subr.mxu0 0.0
    %1156 = vmatpush1.msra.mxu0 0.0
    %1157 = vmatprep.subr.mxu0 0.0
    %1158 = vmatpush1.msra.mxu0 0.0
    %1159 = vmatprep.subr.mxu0 0.0
    %1160 = vmatpush1.msra.mxu0 0.0
    %1161 = vmatprep.subr.mxu0 0.0
    %1162 = vmatpush1.msra.mxu0 0.0
    %1163 = vmatprep.subr.mxu0 0.0
    %1164 = vmatpush1.msra.mxu0 0.0
    %1165 = vmatprep.subr.mxu0 0.0
    %1166 = vmatpush1.msra.mxu0 0.0
    %1167 = vmatprep.subr.mxu0 0.0
    %1168 = vmatpush1.msra.mxu0 0.0
    %1169 = vmatprep.subr.mxu0 0.0
    %1170 = vmatpush1.msra.mxu0 0.0
    %1171 = vmatprep.subr.mxu0 0.0
    %1172 = vmatpush1.msra.mxu0 0.0
    %1173 = vmatprep.subr.mxu0 0.0
    %1174 = vmatpush1.msra.mxu0 0.0
    %1175 = vmatprep.subr.mxu0 0.0
    %1176 = vmatpush1.msra.mxu0 0.0
    %1177 = vmatprep.subr.mxu0 0.0
    %1178 = vmatpush1.msra.mxu0 0.0
    %1179 = vmatprep.subr.mxu0 0.0
    %1180 = vmatpush1.msra.mxu0 0.0
    %1181 = vmatprep.subr.mxu0 0.0
    %1182 = vmatpush1.msra.mxu0 0.0
    %1183 = vmatprep.mubr.f32.mxu0 0.0
    %1184 = vmatmul.mubr.f32.gmra.mrb[0].mxu0 %v1114
    %v1185 = vpop.f32.mrb[0].mxu0
    %v1186 = vadd.f32 0.0, %v1185
    %v1187 = vpop.f32.mrb[0].mxu0
    %1188 = vmatprep.mubr.f32.mxu0 0.0
    %1189 = vmatmul.mubr.f32.gmra.mrb[0].mxu0 %v1117
    %v1190 = vpop.f32.mrb[0].mxu0
    %v1191 = vadd.f32 0.0, %v1190
    %v1192 = vpop.f32.mrb[0].mxu0
    %1193 = vdwg.mxu0
    %v1195 = vsel %vm294, %v1186, 0
    %v1198 = vsel %vm294, %v1191, 0
    %1200 = vmatprep.subr.mxu0 0.0
    %1201 = vmatpush1.msra.mxu0 %v852
    %1202 = vmatprep.subr.mxu0 0.0
    %1203 = vmatpush1.msra.mxu0 0.0
    %1204 = vmatprep.subr.mxu0 0.0
    %1205 = vmatpush1.msra.mxu0 0.0
    %1206 = vmatprep.subr.mxu0 0.0
    %1207 = vmatpush1.msra.mxu0 0.0
    %1208 = vmatprep.subr.mxu0 0.0
    %1209 = vmatpush1.msra.mxu0 0.0
    %1210 = vmatprep.subr.mxu0 0.0
    %1211 = vmatpush1.msra.mxu0 0.0
    %1212 = vmatprep.subr.mxu0 0.0
    %1213 = vmatpush1.msra.mxu0 0.0
    %1214 = vmatprep.subr.mxu0 0.0
    %1215 = vmatpush1.msra.mxu0 0.0
    %1216 = vmatprep.subr.mxu0 0.0
    %1217 = vmatpush1.msra.mxu0 0.0
    %1218 = vmatprep.subr.mxu0 0.0
    %1219 = vmatpush1.msra.mxu0 0.0
    %1220 = vmatprep.subr.mxu0 0.0
    %1221 = vmatpush1.msra.mxu0 0.0
    %1222 = vmatprep.subr.mxu0 0.0
    %1223 = vmatpush1.msra.mxu0 0.0
    %1224 = vmatprep.subr.mxu0 0.0
    %1225 = vmatpush1.msra.mxu0 0.0
    %1226 = vmatprep.subr.mxu0 0.0
    %1227 = vmatpush1.msra.mxu0 0.0
    %1228 = vmatprep.subr.mxu0 0.0
    %1229 = vmatpush1.msra.mxu0 0.0
    %1230 = vmatprep.subr.mxu0 0.0
    %1231 = vmatpush1.msra.mxu0 0.0
    %1232 = vmatprep.subr.mxu0 0.0
    %1233 = vmatpush1.msra.mxu0 0.0
    %1234 = vmatprep.subr.mxu0 0.0
    %1235 = vmatpush1.msra.mxu0 0.0
    %1236 = vmatprep.subr.mxu0 0.0
    %1237 = vmatpush1.msra.mxu0 0.0
    %1238 = vmatprep.subr.mxu0 0.0
    %1239 = vmatpush1.msra.mxu0 0.0
    %1240 = vmatprep.subr.mxu0 0.0
    %1241 = vmatpush1.msra.mxu0 0.0
    %1242 = vmatprep.subr.mxu0 0.0
    %1243 = vmatpush1.msra.mxu0 0.0
    %1244 = vmatprep.subr.mxu0 0.0
    %1245 = vmatpush1.msra.mxu0 0.0
    %1246 = vmatprep.subr.mxu0 0.0
    %1247 = vmatpush1.msra.mxu0 0.0
    %1248 = vmatprep.subr.mxu0 0.0
    %1249 = vmatpush1.msra.mxu0 0.0
    %1250 = vmatprep.subr.mxu0 0.0
    %1251 = vmatpush1.msra.mxu0 0.0
    %1252 = vmatprep.subr.mxu0 0.0
    %1253 = vmatpush1.msra.mxu0 0.0
    %1254 = vmatprep.subr.mxu0 0.0
    %1255 = vmatpush1.msra.mxu0 0.0
    %1256 = vmatprep.subr.mxu0 0.0
    %1257 = vmatpush1.msra.mxu0 0.0
    %1258 = vmatprep.subr.mxu0 0.0
    %1259 = vmatpush1.msra.mxu0 0.0
    %1260 = vmatprep.subr.mxu0 0.0
    %1261 = vmatpush1.msra.mxu0 0.0
    %1262 = vmatprep.subr.mxu0 0.0
    %1263 = vmatpush1.msra.mxu0 0.0
    %1264 = vmatprep.mubr.f32.mxu0 0.0
    %1265 = vmatmul.mubr.f32.gmra.mrb[0].mxu0 %v1195
    %v1266 = vpop.f32.mrb[0].mxu0
    %v1267 = vadd.f32 0.0, %v1266
    %v1268 = vpop.f32.mrb[0].mxu0
    %1269 = vmatprep.mubr.f32.mxu0 0.0
    %1270 = vmatmul.mubr.f32.gmra.mrb[0].mxu0 %v1198
    %v1271 = vpop.f32.mrb[0].mxu0
    %v1272 = vadd.f32 0.0, %v1271
    %v1273 = vpop.f32.mrb[0].mxu0
    %1274 = vdwg.mxu0
    %v1275 = vadd.f32 %v839, %v1267
    %v1276 = vadd.f32 %v840, %v1272
    %v1277 = vlaneseq
    %v1278 = vshrl.u32 %v1277, 7
    %v1279 = vsub.s32 0, %v1278
    %v1280 = vrot.slane %v845, %v1279
    %v1281 = vadd.f32 %v1275, %v1280
    %v1282 = vadd.f32 %v1276, %v1280
    %v1283 = vsel %vm167, %v1281, 0.0
    %1284 = vadd.xlane.f32.xlu0 %v1283
    %v1285 = vpop.xlane.xlu0 %1284
    %v1286 = vsel %vm167, %v1282, 0.0
    %1287 = vadd.xlane.f32.xlu0 %v1286
    %v1288 = vpop.xlane.xlu0 %1287
    %v1289 = vmul.f32 %v1285, %v174
    %v1290 = vmul.f32 %v1288, %v174
    %v1291 = vsub.f32 %v1281, %v1289
    %v1292 = vsub.f32 %v1282, %v1290
    %v1293 = vmul.f32 %v1291, %v1291
    %v1294 = vmul.f32 %v1292, %v1292
    %v1295 = vsel %vm167, %v1293, 0.0
    %1296 = vadd.xlane.f32.xlu0 %v1295
    %v1297 = vpop.xlane.xlu0 %1296
    %v1298 = vsel %vm167, %v1294, 0.0
    %1299 = vadd.xlane.f32.xlu0 %v1298
    %v1300 = vpop.xlane.xlu0 %1299
    %v1301 = vmul.f32 %v1297, %v174
    %v1302 = vmul.f32 %v1300, %v174
    %v1303 = vadd.f32 %v1301, 1e-05
    %v1304 = vadd.f32 %v1302, 1e-05
    %v1305 = vrsqrt.pop %v1303
    %v1306 = vrsqrt.pop %v1304
    %v1307 = vmul.f32 %v1291, %v1305
    %v1308 = vmul.f32 %v1292, %v1306
    %v1309 = vlaneseq
    %v1310 = vshrl.u32 %v1309, 7
    %v1311 = vsub.s32 0, %v1310
    %v1312 = vrot.slane %v843, %v1311
    %v1313 = vmul.f32 %v1307, %v1312
    %v1314 = vmul.f32 %v1308, %v1312
    %v1315 = vlaneseq
    %v1316 = vshrl.u32 %v1315, 7
    %v1317 = vsub.s32 0, %v1316
    %v1318 = vrot.slane %v844, %v1317
    %v1319 = vadd.f32 %v1313, %v1318
    %v1320 = vadd.f32 %v1314, %v1318
    %v1321 = vlaneseq
    %v1322 = vshrl.u32 %v1321, 7
    %v1323 = vsub.s32 0, %v1322
    %v1324 = vrot.slane %v847, %v1323
    %v1326 = vsel %vm167, %v1319, 0
    %v1329 = vsel %vm167, %v1320, 0
    %1331 = vmatprep.subr.mxu0 0.0
    %1332 = vmatpush1.msra.mxu0 %v853
    %1333 = vmatprep.subr.mxu0 0.0
    %1334 = vmatpush1.msra.mxu0 %v854
    %1335 = vmatprep.subr.mxu0 0.0
    %1336 = vmatpush1.msra.mxu0 %v855
    %1337 = vmatprep.subr.mxu0 0.0
    %1338 = vmatpush1.msra.mxu0 %v856
    %1339 = vmatprep.subr.mxu0 0.0
    %1340 = vmatpush1.msra.mxu0 0.0
    %1341 = vmatprep.subr.mxu0 0.0
    %1342 = vmatpush1.msra.mxu0 0.0
    %1343 = vmatprep.subr.mxu0 0.0
    %1344 = vmatpush1.msra.mxu0 0.0
    %1345 = vmatprep.subr.mxu0 0.0
    %1346 = vmatpush1.msra.mxu0 0.0
    %1347 = vmatprep.subr.mxu0 0.0
    %1348 = vmatpush1.msra.mxu0 0.0
    %1349 = vmatprep.subr.mxu0 0.0
    %1350 = vmatpush1.msra.mxu0 0.0
    %1351 = vmatprep.subr.mxu0 0.0
    %1352 = vmatpush1.msra.mxu0 0.0
    %1353 = vmatprep.subr.mxu0 0.0
    %1354 = vmatpush1.msra.mxu0 0.0
    %1355 = vmatprep.subr.mxu0 0.0
    %1356 = vmatpush1.msra.mxu0 0.0
    %1357 = vmatprep.subr.mxu0 0.0
    %1358 = vmatpush1.msra.mxu0 0.0
    %1359 = vmatprep.subr.mxu0 0.0
    %1360 = vmatpush1.msra.mxu0 0.0
    %1361 = vmatprep.subr.mxu0 0.0
    %1362 = vmatpush1.msra.mxu0 0.0
    %1363 = vmatprep.subr.mxu0 0.0
    %1364 = vmatpush1.msra.mxu0 0.0
    %1365 = vmatprep.subr.mxu0 0.0
    %1366 = vmatpush1.msra.mxu0 0.0
    %1367 = vmatprep.subr.mxu0 0.0
    %1368 = vmatpush1.msra.mxu0 0.0
    %1369 = vmatprep.subr.mxu0 0.0
    %1370 = vmatpush1.msra.mxu0 0.0
    %1371 = vmatprep.subr.mxu0 0.0
    %1372 = vmatpush1.msra.mxu0 0.0
    %1373 = vmatprep.subr.mxu0 0.0
    %1374 = vmatpush1.msra.mxu0 0.0
    %1375 = vmatprep.subr.mxu0 0.0
    %1376 = vmatpush1.msra.mxu0 0.0
    %1377 = vmatprep.subr.mxu0 0.0
    %1378 = vmatpush1.msra.mxu0 0.0
    %1379 = vmatprep.subr.mxu0 0.0
    %1380 = vmatpush1.msra.mxu0 0.0
    %1381 = vmatprep.subr.mxu0 0.0
    %1382 = vmatpush1.msra.mxu0 0.0
    %1383 = vmatprep.subr.mxu0 0.0
    %1384 = vmatpush1.msra.mxu0 0.0
    %1385 = vmatprep.subr.mxu0 0.0
    %1386 = vmatpush1.msra.mxu0 0.0
    %1387 = vmatprep.subr.mxu0 0.0
    %1388 = vmatpush1.msra.mxu0 0.0
    %1389 = vmatprep.subr.mxu0 0.0
    %1390 = vmatpush1.msra.mxu0 0.0
    %1391 = vmatprep.subr.mxu0 0.0
    %1392 = vmatpush1.msra.mxu0 0.0
    %1393 = vmatprep.subr.mxu0 0.0
    %1394 = vmatpush1.msra.mxu0 0.0
    %1395 = vmatprep.mubr.f32.mxu0 0.0
    %1396 = vmatmul.mubr.f32.gmra.mrb[0].mxu0 %v1326
    %v1397 = vpop.f32.mrb[0].mxu0
    %v1398 = vadd.f32 %v1324, %v1397
    %v1399 = vpop.f32.mrb[0].mxu0
    %1400 = vmatprep.mubr.f32.mxu0 0.0
    %1401 = vmatmul.mubr.f32.gmra.mrb[0].mxu0 %v1329
    %v1402 = vpop.f32.mrb[0].mxu0
    %v1403 = vadd.f32 %v1324, %v1402
    %v1404 = vpop.f32.mrb[0].mxu0
    %1405 = vdwg.mxu0
    %v1406 = vmul.f32 %v1398, 0.5
    %v1407 = vmul.f32 %v1403, 0.5
    %v1408 = vmul.f32 %v1398, 0.70710677
    %v1409 = vmul.f32 %v1403, 0.70710677
    %vm1410 = vcmp.ge.f32.partialorder %v1408, 0.0
    %vm1411 = vcmp.ge.f32.partialorder %v1409, 0.0
    %v1412 = vsel %vm1410, 1.0, -1.0
    %v1413 = vsel %vm1411, 1.0, -1.0
    %v1414 = vand.u32 2147483647, %v1408
    %v1415 = vand.u32 2147483647, %v1409
    %v1416 = vmul.f32 %v1414, 0.3275911
    %v1417 = vmul.f32 %v1415, 0.3275911
    %v1418 = vadd.f32 %v1416, 1.0
    %v1419 = vadd.f32 %v1417, 1.0
    %v1420 = vrcp.pop %v1418
    %v1421 = vmul.f32 1.0, %v1420
    %v1422 = vrcp.pop %v1419
    %v1423 = vmul.f32 1.0, %v1422
    %v1424 = vmul.f32 %v1421, 1.0614054
    %v1425 = vmul.f32 %v1423, 1.0614054
    %v1426 = vadd.f32 %v1424, -1.4531521
    %v1427 = vadd.f32 %v1425, -1.4531521
    %v1428 = vmul.f32 %v1426, %v1421
    %v1429 = vmul.f32 %v1427, %v1423
    %v1430 = vadd.f32 %v1428, 1.4214138
    %v1431 = vadd.f32 %v1429, 1.4214138
    %v1432 = vmul.f32 %v1430, %v1421
    %v1433 = vmul.f32 %v1431, %v1423
    %v1434 = vadd.f32 %v1432, -0.28449672
    %v1435 = vadd.f32 %v1433, -0.28449672
    %v1436 = vmul.f32 %v1434, %v1421
    %v1437 = vmul.f32 %v1435, %v1423
    %v1438 = vadd.f32 %v1436, 0.2548296
    %v1439 = vadd.f32 %v1437, 0.2548296
    %v1440 = vmul.f32 %v1438, %v1421
    %v1441 = vmul.f32 %v1439, %v1423
    %v1442 = vsub.f32 0.0, %v1414
    %v1443 = vsub.f32 0.0, %v1415
    %v1444 = vmul.f32 %v1442, %v1414
    %v1445 = vmul.f32 %v1443, %v1415
    %v1446 = vmul.f32 %v1444, 1.442695
    %v1447 = vpow.pop %v1446
    %v1448 = vmul.f32 %v1445, 1.442695
    %v1449 = vpow.pop %v1448
    %v1450 = vmul.f32 %v1440, %v1447
    %v1451 = vmul.f32 %v1441, %v1449
    %v1452 = vsub.f32 1.0, %v1450
    %v1453 = vsub.f32 1.0, %v1451
    %v1454 = vmul.f32 %v1412, %v1452
    %v1455 = vmul.f32 %v1413, %v1453
    %v1456 = vadd.f32 %v1454, 1.0
    %v1457 = vadd.f32 %v1455, 1.0
    %v1458 = vmul.f32 %v1406, %v1456
    %v1459 = vmul.f32 %v1407, %v1457
    %1460 = vmatprep.subr.mxu0 0.0
    %1461 = vmatpush1.msra.mxu0 %v857
    %1462 = vmatprep.subr.mxu0 0.0
    %1463 = vmatpush1.msra.mxu0 %v858
    %1464 = vmatprep.subr.mxu0 0.0
    %1465 = vmatpush1.msra.mxu0 %v859
    %1466 = vmatprep.subr.mxu0 0.0
    %1467 = vmatpush1.msra.mxu0 %v860
    %1468 = vmatprep.subr.mxu0 0.0
    %1469 = vmatpush1.msra.mxu0 %v861
    %1470 = vmatprep.subr.mxu0 0.0
    %1471 = vmatpush1.msra.mxu0 %v862
    %1472 = vmatprep.subr.mxu0 0.0
    %1473 = vmatpush1.msra.mxu0 %v863
    %1474 = vmatprep.subr.mxu0 0.0
    %1475 = vmatpush1.msra.mxu0 %v864
    %1476 = vmatprep.subr.mxu0 0.0
    %1477 = vmatpush1.msra.mxu0 %v865
    %1478 = vmatprep.subr.mxu0 0.0
    %1479 = vmatpush1.msra.mxu0 %v866
    %1480 = vmatprep.subr.mxu0 0.0
    %1481 = vmatpush1.msra.mxu0 %v867
    %1482 = vmatprep.subr.mxu0 0.0
    %1483 = vmatpush1.msra.mxu0 %v868
    %1484 = vmatprep.subr.mxu0 0.0
    %1485 = vmatpush1.msra.mxu0 %v869
    %1486 = vmatprep.subr.mxu0 0.0
    %1487 = vmatpush1.msra.mxu0 %v870
    %1488 = vmatprep.subr.mxu0 0.0
    %1489 = vmatpush1.msra.mxu0 %v871
    %1490 = vmatprep.subr.mxu0 0.0
    %1491 = vmatpush1.msra.mxu0 %v872
    %1492 = vmatprep.subr.mxu0 0.0
    %1493 = vmatpush1.msra.mxu0 0.0
    %1494 = vmatprep.subr.mxu0 0.0
    %1495 = vmatpush1.msra.mxu0 0.0
    %1496 = vmatprep.subr.mxu0 0.0
    %1497 = vmatpush1.msra.mxu0 0.0
    %1498 = vmatprep.subr.mxu0 0.0
    %1499 = vmatpush1.msra.mxu0 0.0
    %1500 = vmatprep.subr.mxu0 0.0
    %1501 = vmatpush1.msra.mxu0 0.0
    %1502 = vmatprep.subr.mxu0 0.0
    %1503 = vmatpush1.msra.mxu0 0.0
    %1504 = vmatprep.subr.mxu0 0.0
    %1505 = vmatpush1.msra.mxu0 0.0
    %1506 = vmatprep.subr.mxu0 0.0
    %1507 = vmatpush1.msra.mxu0 0.0
    %1508 = vmatprep.subr.mxu0 0.0
    %1509 = vmatpush1.msra.mxu0 0.0
    %1510 = vmatprep.subr.mxu0 0.0
    %1511 = vmatpush1.msra.mxu0 0.0
    %1512 = vmatprep.subr.mxu0 0.0
    %1513 = vmatpush1.msra.mxu0 0.0
    %1514 = vmatprep.subr.mxu0 0.0
    %1515 = vmatpush1.msra.mxu0 0.0
    %1516 = vmatprep.subr.mxu0 0.0
    %1517 = vmatpush1.msra.mxu0 0.0
    %1518 = vmatprep.subr.mxu0 0.0
    %1519 = vmatpush1.msra.mxu0 0.0
    %1520 = vmatprep.subr.mxu0 0.0
    %1521 = vmatpush1.msra.mxu0 0.0
    %1522 = vmatprep.subr.mxu0 0.0
    %1523 = vmatpush1.msra.mxu0 0.0
    %1524 = vmatprep.mubr.f32.mxu0 0.0
    %1525 = vmatmul.mubr.f32.gmra.mrb[0].mxu0 %v1458
    %v1526 = vpop.f32.mrb[0].mxu0
    %v1527 = vadd.f32 0.0, %v1526
    %v1528 = vpop.f32.mrb[0].mxu0
    %1529 = vmatprep.mubr.f32.mxu0 0.0
    %1530 = vmatmul.mubr.f32.gmra.mrb[0].mxu0 %v1459
    %v1531 = vpop.f32.mrb[0].mxu0
    %v1532 = vadd.f32 0.0, %v1531
    %v1533 = vpop.f32.mrb[0].mxu0
    %1534 = vdwg.mxu0
    %v1535 = vadd.f32 %v1281, %v1527
    %v1536 = vadd.f32 %v1282, %v1532
    %v1537 = vlaneseq
    %v1538 = vshrl.u32 %v1537, 7
    %v1539 = vsub.s32 0, %v1538
    %v1540 = vrot.slane %v846, %v1539
    %v1541 = vadd.f32 %v1535, %v1540
    %v1542 = vadd.f32 %v1536, %v1540
    %v1543 = vld [vmem:[#allocation2 + $0x60] sm:$0xff]
    %v1545 = vsel %vm382, %v1543, 0
    %1547 = vmatprep.subr.mxu0 0.0
    %1548 = vmatpush1.msra.mxu0 %v1541
    %1549 = vmatprep.subr.mxu0 0.0
    %1550 = vmatpush1.msra.mxu0 %v1542
    %1551 = vmatprep.subr.mxu0 0.0
    %1552 = vmatpush1.msra.mxu0 0.0
    %1553 = vmatprep.subr.mxu0 0.0
    %1554 = vmatpush1.msra.mxu0 0.0
    %1555 = vmatprep.subr.mxu0 0.0
    %1556 = vmatpush1.msra.mxu0 0.0
    %1557 = vmatprep.subr.mxu0 0.0
    %1558 = vmatpush1.msra.mxu0 0.0
    %1559 = vmatprep.subr.mxu0 0.0
    %1560 = vmatpush1.msra.mxu0 0.0
    %1561 = vmatprep.subr.mxu0 0.0
    %1562 = vmatpush1.msra.mxu0 0.0
    %1563 = vmatprep.subr.mxu0 0.0
    %1564 = vmatpush1.msra.mxu0 0.0
    %1565 = vmatprep.subr.mxu0 0.0
    %1566 = vmatpush1.msra.mxu0 0.0
    %1567 = vmatprep.subr.mxu0 0.0
    %1568 = vmatpush1.msra.mxu0 0.0
    %1569 = vmatprep.subr.mxu0 0.0
    %1570 = vmatpush1.msra.mxu0 0.0
    %1571 = vmatprep.subr.mxu0 0.0
    %1572 = vmatpush1.msra.mxu0 0.0
    %1573 = vmatprep.subr.mxu0 0.0
    %1574 = vmatpush1.msra.mxu0 0.0
    %1575 = vmatprep.subr.mxu0 0.0
    %1576 = vmatpush1.msra.mxu0 0.0
    %1577 = vmatprep.subr.mxu0 0.0
    %1578 = vmatpush1.msra.mxu0 0.0
    %1579 = vmatprep.subr.mxu0 0.0
    %1580 = vmatpush1.msra.mxu0 0.0
    %1581 = vmatprep.subr.mxu0 0.0
    %1582 = vmatpush1.msra.mxu0 0.0
    %1583 = vmatprep.subr.mxu0 0.0
    %1584 = vmatpush1.msra.mxu0 0.0
    %1585 = vmatprep.subr.mxu0 0.0
    %1586 = vmatpush1.msra.mxu0 0.0
    %1587 = vmatprep.subr.mxu0 0.0
    %1588 = vmatpush1.msra.mxu0 0.0
    %1589 = vmatprep.subr.mxu0 0.0
    %1590 = vmatpush1.msra.mxu0 0.0
    %1591 = vmatprep.subr.mxu0 0.0
    %1592 = vmatpush1.msra.mxu0 0.0
    %1593 = vmatprep.subr.mxu0 0.0
    %1594 = vmatpush1.msra.mxu0 0.0
    %1595 = vmatprep.subr.mxu0 0.0
    %1596 = vmatpush1.msra.mxu0 0.0
    %1597 = vmatprep.subr.mxu0 0.0
    %1598 = vmatpush1.msra.mxu0 0.0
    %1599 = vmatprep.subr.mxu0 0.0
    %1600 = vmatpush1.msra.mxu0 0.0
    %1601 = vmatprep.subr.mxu0 0.0
    %1602 = vmatpush1.msra.mxu0 0.0
    %1603 = vmatprep.subr.mxu0 0.0
    %1604 = vmatpush1.msra.mxu0 0.0
    %1605 = vmatprep.subr.mxu0 0.0
    %1606 = vmatpush1.msra.mxu0 0.0
    %1607 = vmatprep.subr.mxu0 0.0
    %1608 = vmatpush1.msra.mxu0 0.0
    %1609 = vmatprep.subr.mxu0 0.0
    %1610 = vmatpush1.msra.mxu0 0.0
    %1611 = vmatprep.mubr.f32.mxu0 0.0
    %1612 = vmatmul.mubr.f32.gmra.mrb[0].mxu0 %v1545
    %v1613 = vpop.f32.mrb[0].mxu0
    %v1614 = vadd.f32 0.0, %v1613
    %v1615 = vpop.f32.mrb[0].mxu0
    %1616 = vdwg.mxu0
    %v1617 = vld [vmem:[#allocation2 + $0x208] sm:$0x1]
    %v1618 = vld [vmem:[#allocation2 + $0x209] sm:$0x1]
    %v1619 = vsel %vm167, %v1614, 0.0
    %1620 = vadd.xlane.f32.xlu0 %v1619
    %v1621 = vpop.xlane.xlu0 %1620
    %v1622 = vmul.f32 %v1621, %v174
    %v1623 = vsub.f32 %v1614, %v1622
    %v1624 = vmul.f32 %v1623, %v1623
    %v1625 = vsel %vm167, %v1624, 0.0
    %1626 = vadd.xlane.f32.xlu0 %v1625
    %v1627 = vpop.xlane.xlu0 %1626
    %v1628 = vmul.f32 %v1627, %v174
    %v1629 = vadd.f32 %v1628, 1e-05
    %v1630 = vrsqrt.pop %v1629
    %v1631 = vmul.f32 %v1623, %v1630
    %v1632 = vlaneseq
    %v1633 = vshrl.u32 %v1632, 7
    %v1634 = vsub.s32 0, %v1633
    %v1635 = vrot.slane %v1617, %v1634
    %v1636 = vmul.f32 %v1631, %v1635
    %v1637 = vlaneseq
    %v1638 = vshrl.u32 %v1637, 7
    %v1639 = vsub.s32 0, %v1638
    %v1640 = vrot.slane %v1618, %v1639
    %v1641 = vadd.f32 %v1636, %v1640
    %v1642 = vld [vmem:[#allocation2 + $0x210] sm:$0xff]
    %v1643 = vld [vmem:[#allocation2 + $0x218] sm:$0xff]
    %v1644 = vld [vmem:[#allocation2 + $0x220] sm:$0xff]
    %v1645 = vld [vmem:[#allocation2 + $0x228] sm:$0xff]
    %v1647 = vsel %vm167, %v1641, 0
    %1649 = vmatprep.subr.mxu0 0.0
    %1650 = vmatpush1.msra.mxu0 %v1642
    %1651 = vmatprep.subr.mxu0 0.0
    %1652 = vmatpush1.msra.mxu0 %v1643
    %1653 = vmatprep.subr.mxu0 0.0
    %1654 = vmatpush1.msra.mxu0 %v1644
    %1655 = vmatprep.subr.mxu0 0.0
    %1656 = vmatpush1.msra.mxu0 %v1645
    %1657 = vmatprep.subr.mxu0 0.0
    %1658 = vmatpush1.msra.mxu0 0.0
    %1659 = vmatprep.subr.mxu0 0.0
    %1660 = vmatpush1.msra.mxu0 0.0
    %1661 = vmatprep.subr.mxu0 0.0
    %1662 = vmatpush1.msra.mxu0 0.0
    %1663 = vmatprep.subr.mxu0 0.0
    %1664 = vmatpush1.msra.mxu0 0.0
    %1665 = vmatprep.subr.mxu0 0.0
    %1666 = vmatpush1.msra.mxu0 0.0
    %1667 = vmatprep.subr.mxu0 0.0
    %1668 = vmatpush1.msra.mxu0 0.0
    %1669 = vmatprep.subr.mxu0 0.0
    %1670 = vmatpush1.msra.mxu0 0.0
    %1671 = vmatprep.subr.mxu0 0.0
    %1672 = vmatpush1.msra.mxu0 0.0
    %1673 = vmatprep.subr.mxu0 0.0
    %1674 = vmatpush1.msra.mxu0 0.0
    %1675 = vmatprep.subr.mxu0 0.0
    %1676 = vmatpush1.msra.mxu0 0.0
    %1677 = vmatprep.subr.mxu0 0.0
    %1678 = vmatpush1.msra.mxu0 0.0
    %1679 = vmatprep.subr.mxu0 0.0
    %1680 = vmatpush1.msra.mxu0 0.0
    %1681 = vmatprep.subr.mxu0 0.0
    %1682 = vmatpush1.msra.mxu0 0.0
    %1683 = vmatprep.subr.mxu0 0.0
    %1684 = vmatpush1.msra.mxu0 0.0
    %1685 = vmatprep.subr.mxu0 0.0
    %1686 = vmatpush1.msra.mxu0 0.0
    %1687 = vmatprep.subr.mxu0 0.0
    %1688 = vmatpush1.msra.mxu0 0.0
    %1689 = vmatprep.subr.mxu0 0.0
    %1690 = vmatpush1.msra.mxu0 0.0
    %1691 = vmatprep.subr.mxu0 0.0
    %1692 = vmatpush1.msra.mxu0 0.0
    %1693 = vmatprep.subr.mxu0 0.0
    %1694 = vmatpush1.msra.mxu0 0.0
    %1695 = vmatprep.subr.mxu0 0.0
    %1696 = vmatpush1.msra.mxu0 0.0
    %1697 = vmatprep.subr.mxu0 0.0
    %1698 = vmatpush1.msra.mxu0 0.0
    %1699 = vmatprep.subr.mxu0 0.0
    %1700 = vmatpush1.msra.mxu0 0.0
    %1701 = vmatprep.subr.mxu0 0.0
    %1702 = vmatpush1.msra.mxu0 0.0
    %1703 = vmatprep.subr.mxu0 0.0
    %1704 = vmatpush1.msra.mxu0 0.0
    %1705 = vmatprep.subr.mxu0 0.0
    %1706 = vmatpush1.msra.mxu0 0.0
    %1707 = vmatprep.subr.mxu0 0.0
    %1708 = vmatpush1.msra.mxu0 0.0
    %1709 = vmatprep.subr.mxu0 0.0
    %1710 = vmatpush1.msra.mxu0 0.0
    %1711 = vmatprep.subr.mxu0 0.0
    %1712 = vmatpush1.msra.mxu0 0.0
    %1713 = vmatprep.mubr.f32.mxu0 0.0
    %1714 = vmatmul.mubr.f32.gmra.mrb[0].mxu0 %v1647
    %v1715 = vpop.f32.mrb[0].mxu0
    %v1716 = vadd.f32 0.0, %v1715
    %v1717 = vpop.f32.mrb[0].mxu0
    %1718 = vdwg.mxu0
    %1719 = vst [vmem:[%s2] sm:$0xff] %v1716
    // Predicated region
    $region14: #{forward.1} parent=1 // pred_check
      _
    $region15: #{forward.1} parent=1 // pred_check_branch
      %1721 = sbr.rel (0) target = $region17
    $region16: #{forward.1} parent=1 // pred_region
      _
    $region17: #{forward.1} parent=1 // pred_fallthru
      _
    // Predicated region
    $region18: #{forward.1} parent=1 // pred_check
      _
    $region19: #{forward.1} parent=1 // pred_check_branch
      %1723 = sbr.rel (0) target = $region21
    $region20: #{forward.1} parent=1 // pred_region
      _
    $region21: #{forward.1} parent=1 // pred_fallthru
      _
    %1724 = vsyncpa [#allocation3], 1

</llo_original>
